<compile_context>
chip_gen: v7x
topology: tpu7x:2x2x1
jax: 0.10.0
libtpu: 0.0.40
codegen_flags: <defaults>
</compile_context>

<pallas_src>
import jax
import jax.numpy as jnp
from jax.experimental import pallas as pl
from jax.experimental.pallas import tpu as pltpu


# ----------------------------------------------------------------------------- kernel
def lstm_clf_kernel(x_ref, pa_ref, pb_ref, out_ref):
    """x_ref: (T, B, D) time-major input.
    pa_ref: (D + 2H + 24, 8H) slab = [wih0_big | wcat | bias(8 rows) | h0(8) | c0(8)].
    pb_ref: (H + 8 + CP + 8, CP) slab = [w_fc1 | b_fc1(8) | w_fc2 | b_fc2(8)].
    out_ref: (B, CP) lane-dense padded logits (first n_class columns are real).
    """
    T, B, D = x_ref.shape
    G8 = pa_ref.shape[-1]                 # 8*H  (joint gate width, both layers)
    H = G8 // 8
    H2, H4, H6 = 2 * H, 4 * H, 6 * H
    CP = pb_ref.shape[-1]                 # padded classifier width (128 lanes)

    # ---- parameter views: 2 slabs -> static slices (only 3 input DMAs) -------
    wih0 = pa_ref[0:D, :]                                    # (D, 8H)
    wcat = pa_ref[D:D + H2, :]                               # (2H, 8H) fused recurrent W
    bias = pa_ref[D + H2:D + H2 + 1, :]                      # (1, 8H)  b0 | b1 interleaved
    h_pack = pa_ref[D + H2 + 8:D + H2 + 8 + B, :][:, 0:H2]   # (B, 2H) = [h0_l0 | h0_l1]
    c_pack = pa_ref[D + H2 + 16:D + H2 + 16 + B, :][:, 0:H2]

    w_fc1 = pb_ref[0:H, :]                                   # (H, CP)  BatchNorm folded in
    b_fc1 = pb_ref[H:H + B, :]                               # (B, CP)  pre-broadcast rows
    w_fc2 = pb_ref[H + 8:H + 8 + CP, :]                      # (CP, CP) zero-padded
    b_fc2 = pb_ref[H + 8 + CP:H + 8 + CP + B, :]             # (B, CP)

    # ---- hoisted layer-0 input projection for ALL steps (off the chain) ------
    # proj[t*B:(t+1)*B]: layer-0 gate cols = x_t @ Wih0 + b0 ; layer-1 gate cols = b1
    x_all = x_ref[...].reshape(T * B, D)
    proj = jnp.dot(x_all, wih0, preferred_element_type=jnp.float32) + bias

    def joint_cell(g, c):
        # g: (B, 8H), columns = [i0 i1 | f0 f1 | o0 o1 | 2*g0 2*g1]
        # One sigmoid push for every gate of both layers; tanh(x)=2*sigmoid(2x)-1
        # for the g-gate (the x2 is pre-folded into the weights/biases).
        s = jax.nn.sigmoid(g)
        i_g = s[:, 0:H2]
        f_g = s[:, H2:H4]
        o_g = s[:, H4:H6]
        g_g = 2.0 * s[:, H6:] - 1.0
        c_n = f_g * c + i_g * g_g
        h_n = o_g * jnp.tanh(c_n)            # one tanh push for both layers
        return h_n, c_n

    # ---- bootstrap: layer-0 step 0 (layer-1 half of the joint cell discarded) --
    fused = jnp.dot(h_pack, wcat, preferred_element_type=jnp.float32)
    h_new, c_new = joint_cell(fused + proj[0:B, :], c_pack)
    lane = jax.lax.broadcasted_iota(jnp.int32, (B, H2), 1)
    keep_l0 = lane < H
    h_pack = jnp.where(keep_l0, h_new, h_pack)   # [h_l0(0) | h0_l1]
    c_pack = jnp.where(keep_l0, c_new, c_pack)

    # ---- recurrence: ONE fused (B,2H)@(2H,8H) MXU push per step, stationary RHS,
    #      no per-step concat / bias broadcast. Fully unrolled (T small, static). --
    for t in range(T):
        nxt = min(t + 1, T - 1)                  # last step: layer-0 half is dead
        fused = jnp.dot(h_pack, wcat, preferred_element_type=jnp.float32)
        g = fused + proj[nxt * B:(nxt + 1) * B, :]
        h_pack, c_pack = joint_cell(g, c_pack)
        # h_pack is now [h_l0(t+1) | h_l1(t)], c_pack likewise.

    h_last = h_pack[:, H:H2]                     # hn[-1] = h_l1(T-1)

    # ---- head: Linear (+folded BatchNorm) -> LeakyReLU(0.01) -> Linear, lane-dense --
    z = jnp.dot(h_last, w_fc1, preferred_element_type=jnp.float32) + b_fc1
    z = jnp.maximum(z, 0.01 * z)
    out_ref[...] = jnp.dot(z, w_fc2, preferred_element_type=jnp.float32) + b_fc2


# ----------------------------------------------------------------------------- wrapper
def lstm_clf_forward(x, slab_a, slab_b, n_class):
    """x: (B, T, in_dim) float32, batch_first like the PyTorch module."""
    B, T, D = x.shape
    assert B <= 8, "parameter slabs pre-broadcast bias/state rows to 8 sublanes"
    x_tm = jnp.transpose(x, (1, 0, 2))           # (T, B, D); tiny, single XLA op
    cp = slab_b.shape[-1]
    vmem = pl.BlockSpec(memory_space=pltpu.MemorySpace.VMEM)
    out_pad = pl.pallas_call(
        lstm_clf_kernel,
        out_shape=jax.ShapeDtypeStruct((B, cp), jnp.float32),
        in_specs=[vmem, vmem, vmem],
        out_specs=vmem,
    )(x_tm, slab_a, slab_b)
    return out_pad[:, :n_class]


# ----------------------------------------------------------------------------- params
def init_raw_params(key, in_dim=64, h_dim=32, cls_dim=32, n_class=3):
    """PyTorch-layout weights with PyTorch-style init (gate row order [i,f,g,o])."""
    ks = jax.random.split(key, 14)
    u = lambda k, shape, b: jax.random.uniform(k, shape, jnp.float32, minval=-b, maxval=b)
    s = 1.0 / h_dim ** 0.5                       # nn.LSTM init bound
    kh = (6.0 / h_dim) ** 0.5                    # kaiming_uniform_ bound for h0/c0
    return {
        "w_ih0": u(ks[0], (4 * h_dim, in_dim), s),
        "w_hh0": u(ks[1], (4 * h_dim, h_dim), s),
        "b_ih0": u(ks[2], (4 * h_dim,), s),
        "b_hh0": u(ks[3], (4 * h_dim,), s),
        "w_ih1": u(ks[4], (4 * h_dim, h_dim), s),
        "w_hh1": u(ks[5], (4 * h_dim, h_dim), s),
        "b_ih1": u(ks[6], (4 * h_dim,), s),
        "b_hh1": u(ks[7], (4 * h_dim,), s),
        "h0": u(ks[8], (2, h_dim), kh),
        "c0": u(ks[9], (2, h_dim), kh),
        "w_fc1": u(ks[10], (cls_dim, h_dim), 1.0 / h_dim ** 0.5),
        "b_fc1": u(ks[11], (cls_dim,), 1.0 / h_dim ** 0.5),
        "w_fc2": u(ks[12], (n_class, cls_dim), 1.0 / cls_dim ** 0.5),
        "b_fc2": u(ks[13], (n_class,), 1.0 / cls_dim ** 0.5),
    }


def build_slabs(raw, in_dim, h_dim, cls_dim, n_class, cls_pad=128):
    """Pack all parameters into 2 contiguous f32 slabs (2 prologue DMAs)."""
    H = h_dim

    def interleave(w_t, slot):
        # w_t: (R, 4H), PyTorch gate column order [i, f, g, o]  ->  (R, 8H) with
        # joint layout [i0 i1 | f0 f1 | o0 o1 | 2*g0 2*g1]; slot 0/1 = layer lane.
        i_, f_, g_, o_ = jnp.split(w_t, 4, axis=-1)
        z = jnp.zeros_like(i_)
        g2 = 2.0 * g_                            # tanh(x) = 2*sigmoid(2x) - 1 trick
        parts = [i_, z, f_, z, o_, z, g2, z] if slot == 0 else [z, i_, z, f_, z, o_, z, g2]
        return jnp.concatenate(parts, axis=-1)

    wih0_big = interleave(raw["w_ih0"].T, 0)                                  # (D, 8H)
    wcat = jnp.concatenate(
        [interleave(raw["w_hh0"].T, 0) + interleave(raw["w_ih1"].T, 1),
         interleave(raw["w_hh1"].T, 1)], axis=0)                              # (2H, 8H)
    bias_big = (interleave((raw["b_ih0"] + raw["b_hh0"])[None, :], 0)
                + interleave((raw["b_ih1"] + raw["b_hh1"])[None, :], 1))      # (1, 8H)

    pad = 8 * H - 2 * H
    h0_row = jnp.concatenate([raw["h0"][0], raw["h0"][1],
                              jnp.zeros((pad,), jnp.float32)])[None, :]
    c0_row = jnp.concatenate([raw["c0"][0], raw["c0"][1],
                              jnp.zeros((pad,), jnp.float32)])[None, :]
    slab_a = jnp.concatenate([
        wih0_big,
        wcat,
        jnp.tile(bias_big, (8, 1)),
        jnp.tile(h0_row, (8, 1)),
        jnp.tile(c0_row, (8, 1)),
    ], axis=0)                                                                # (D+2H+24, 8H)

    # Head: fold BatchNorm1d (eval, identity running stats) into fc1, pad lane-dense.
    # TODO(synk): for a trained checkpoint, fold the checkpoint's running_mean/var
    #             and gamma/beta here instead of identity statistics.
    bn_scale = 1.0 / (1.0 + 1e-5) ** 0.5
    w1 = raw["w_fc1"].T * bn_scale                                            # (H, cls)
    b1 = raw["b_fc1"] * bn_scale
    w_fc1p = jnp.zeros((H, cls_pad), jnp.float32).at[:, :cls_dim].set(w1)
    b_fc1p = jnp.zeros((cls_pad,), jnp.float32).at[:cls_dim].set(b1)
    w_fc2p = jnp.zeros((cls_pad, cls_pad), jnp.float32).at[:cls_dim, :n_class].set(raw["w_fc2"].T)
    b_fc2p = jnp.zeros((cls_pad,), jnp.float32).at[:n_class].set(raw["b_fc2"])
    slab_b = jnp.concatenate([
        w_fc1p,
        jnp.tile(b_fc1p[None, :], (8, 1)),
        w_fc2p,
        jnp.tile(b_fc2p[None, :], (8, 1)),
    ], axis=0)                                                                # (H+8+CP+8, CP)
    return slab_a, slab_b


# ----------------------------------------------------------------------------- reference
def lstm_clf_reference(x, raw):
    """Pure-JAX eval-mode forward mirroring the PyTorch module (validation only)."""
    B, T, _ = x.shape
    H = raw["w_hh0"].shape[1]

    def cell(xg, h, c, w_hh, b):
        g = xg + h @ w_hh.T + b
        i, f, gg, o = jnp.split(g, 4, axis=-1)       # PyTorch gate order [i, f, g, o]
        c = jax.nn.sigmoid(f) * c + jax.nn.sigmoid(i) * jnp.tanh(gg)
        return jax.nn.sigmoid(o) * jnp.tanh(c), c

    h0 = jnp.broadcast_to(raw["h0"][0], (B, H)); c0 = jnp.broadcast_to(raw["c0"][0], (B, H))
    h1 = jnp.broadcast_to(raw["h0"][1], (B, H)); c1 = jnp.broadcast_to(raw["c0"][1], (B, H))
    b0 = raw["b_ih0"] + raw["b_hh0"]
    b1 = raw["b_ih1"] + raw["b_hh1"]
    for t in range(T):
        h0, c0 = cell(x[:, t, :] @ raw["w_ih0"].T, h0, c0, raw["w_hh0"], b0)
        h1, c1 = cell(h0 @ raw["w_ih1"].T, h1, c1, raw["w_hh1"], b1)
    z = h1 @ raw["w_fc1"].T + raw["b_fc1"]
    z = z / (1.0 + 1e-5) ** 0.5                      # BatchNorm1d eval, identity stats
    z = jnp.where(z > 0, z, 0.01 * z)                # LeakyReLU(0.01)
    return z @ raw["w_fc2"].T + raw["b_fc2"]


if __name__ == "__main__":
    # Small shapes: B=8 (fills f32 sublanes), T=8, in_dim=64, H=32 (8H = 256 lanes
    # -> one fused 256-wide gate tile per step), cls_dim=32 padded to 128, 3 classes.
    B, T, IN_DIM, H_DIM, CLS_DIM, N_CLASS = 8, 8, 64, 32, 32, 3

    key = jax.random.PRNGKey(0)
    k_x, k_p = jax.random.split(key)
    x = jax.random.normal(k_x, (B, T, IN_DIM), jnp.float32)
    raw = init_raw_params(k_p, IN_DIM, H_DIM, CLS_DIM, N_CLASS)
    slab_a, slab_b = build_slabs(raw, IN_DIM, H_DIM, CLS_DIM, N_CLASS, cls_pad=128)

    run = jax.jit(lstm_clf_forward, static_argnums=(3,))
    out = run(x, slab_a, slab_b, N_CLASS)
    jax.block_until_ready(out)

    assert out.shape == (B, N_CLASS) and out.dtype == jnp.float32
    assert bool(jnp.all(jnp.isfinite(out)))

    # Loose tolerance: kernel matmuls use the TPU's default (bf16-input, f32-acc)
    # precision, so small deviations from the pure-f32 reference are expected.
    ref = lstm_clf_reference(x, raw)
    err = float(jnp.max(jnp.abs(out - ref)))
    assert err < 5e-2, f"max abs error vs reference: {err}"

    print("KERNEL_OK")
</pallas_src>

<mosaic_0001>
module attributes {stable_mosaic.version = 11 : i64} {
  func.func @lstm_clf_kernel(%arg0: memref<8x8x64xf32, #tpu.memory_space<vmem>>, %arg1: memref<152x256xf32, #tpu.memory_space<vmem>>, %arg2: memref<176x128xf32, #tpu.memory_space<vmem>>, %arg3: memref<8x128xf32, #tpu.memory_space<vmem>>) attributes {dimension_semantics = [], scalar_prefetch = 0 : i64, scratch_operands = 0 : i64, tpu.core_type = #tpu.core_type<tc>} {
    %c0 = arith.constant 0 : index
    %c0_0 = arith.constant 0 : index
    %0 = vector.load %arg1[%c0, %c0_0] : memref<152x256xf32, #tpu.memory_space<vmem>>, vector<64x256xf32>
    %c64 = arith.constant 64 : index
    %c0_1 = arith.constant 0 : index
    %1 = vector.load %arg1[%c64, %c0_1] : memref<152x256xf32, #tpu.memory_space<vmem>>, vector<64x256xf32>
    %c128 = arith.constant 128 : index
    %c0_2 = arith.constant 0 : index
    %2 = vector.load %arg1[%c128, %c0_2] : memref<152x256xf32, #tpu.memory_space<vmem>>, vector<1x256xf32>
    %c136 = arith.constant 136 : index
    %c0_3 = arith.constant 0 : index
    %3 = vector.load %arg1[%c136, %c0_3] : memref<152x256xf32, #tpu.memory_space<vmem>>, vector<8x256xf32>
    %4 = vector.extract_strided_slice %3 {offsets = [0, 0], sizes = [8, 64], strides = [1, 1]} : vector<8x256xf32> to vector<8x64xf32>
    %c144 = arith.constant 144 : index
    %c0_4 = arith.constant 0 : index
    %5 = vector.load %arg1[%c144, %c0_4] : memref<152x256xf32, #tpu.memory_space<vmem>>, vector<8x256xf32>
    %6 = vector.extract_strided_slice %5 {offsets = [0, 0], sizes = [8, 64], strides = [1, 1]} : vector<8x256xf32> to vector<8x64xf32>
    %c0_5 = arith.constant 0 : index
    %c0_6 = arith.constant 0 : index
    %7 = vector.load %arg2[%c0_5, %c0_6] : memref<176x128xf32, #tpu.memory_space<vmem>>, vector<32x128xf32>
    %c32 = arith.constant 32 : index
    %c0_7 = arith.constant 0 : index
    %8 = vector.load %arg2[%c32, %c0_7] : memref<176x128xf32, #tpu.memory_space<vmem>>, vector<8x128xf32>
    %c40 = arith.constant 40 : index
    %c0_8 = arith.constant 0 : index
    %9 = vector.load %arg2[%c40, %c0_8] : memref<176x128xf32, #tpu.memory_space<vmem>>, vector<128x128xf32>
    %c168 = arith.constant 168 : index
    %c0_9 = arith.constant 0 : index
    %10 = vector.load %arg2[%c168, %c0_9] : memref<176x128xf32, #tpu.memory_space<vmem>>, vector<8x128xf32>
    %c0_10 = arith.constant 0 : index
    %c0_11 = arith.constant 0 : index
    %c0_12 = arith.constant 0 : index
    %11 = vector.load %arg0[%c0_10, %c0_11, %c0_12] : memref<8x8x64xf32, #tpu.memory_space<vmem>>, vector<8x8x64xf32>
    %12 = vector.shape_cast %11 : vector<8x8x64xf32> to vector<64x64xf32>
    %cst = arith.constant dense<0.000000e+00> : vector<64x256xf32>
    %13 = tpu.matmul %12, %0, %cst {dimension_numbers = #tpu.dot_dimension_numbers<[1], [0], [0], [1], [0, 0, 1, 1], [], []>} : vector<64x64xf32>, vector<64x256xf32>, vector<64x256xf32> -> vector<64x256xf32>
    %14 = vector.broadcast %2 : vector<1x256xf32> to vector<64x256xf32>
    %15 = arith.addf %13, %14 : vector<64x256xf32>
    %cst_13 = arith.constant dense<0.000000e+00> : vector<8x256xf32>
    %16 = tpu.matmul %4, %1, %cst_13 {dimension_numbers = #tpu.dot_dimension_numbers<[1], [0], [0], [1], [0, 0, 1, 1], [], []>} : vector<8x64xf32>, vector<64x256xf32>, vector<8x256xf32> -> vector<8x256xf32>
    %17 = vector.extract_strided_slice %15 {offsets = [0, 0], sizes = [8, 256], strides = [1, 1]} : vector<64x256xf32> to vector<8x256xf32>
    %18 = arith.addf %16, %17 : vector<8x256xf32>
    %19 = arith.negf %18 : vector<8x256xf32>
    %20 = math.exp %19 : vector<8x256xf32>
    %cst_14 = arith.constant 1.000000e+00 : f32
    %21 = vector.broadcast %cst_14 : f32 to vector<8x256xf32>
    %22 = arith.addf %21, %20 : vector<8x256xf32>
    %23 = arith.divf %21, %22 : vector<8x256xf32>
    %24 = vector.extract_strided_slice %23 {offsets = [0, 0], sizes = [8, 64], strides = [1, 1]} : vector<8x256xf32> to vector<8x64xf32>
    %25 = vector.extract_strided_slice %23 {offsets = [0, 64], sizes = [8, 64], strides = [1, 1]} : vector<8x256xf32> to vector<8x64xf32>
    %26 = vector.extract_strided_slice %23 {offsets = [0, 128], sizes = [8, 64], strides = [1, 1]} : vector<8x256xf32> to vector<8x64xf32>
    %27 = vector.extract_strided_slice %23 {offsets = [0, 192], sizes = [8, 64], strides = [1, 1]} : vector<8x256xf32> to vector<8x64xf32>
    %cst_15 = arith.constant 2.000000e+00 : f32
    %28 = vector.broadcast %cst_15 : f32 to vector<8x64xf32>
    %29 = arith.mulf %28, %27 : vector<8x64xf32>
    %cst_16 = arith.constant 1.000000e+00 : f32
    %30 = vector.broadcast %cst_16 : f32 to vector<8x64xf32>
    %31 = arith.subf %29, %30 : vector<8x64xf32>
    %32 = arith.mulf %25, %6 : vector<8x64xf32>
    %33 = arith.mulf %24, %31 : vector<8x64xf32>
    %34 = arith.addf %32, %33 : vector<8x64xf32>
    %35 = math.tanh %34 : vector<8x64xf32>
    %36 = arith.mulf %26, %35 : vector<8x64xf32>
    %37 = tpu.iota {dimensions = array<i32: 1>} : vector<8x64xi32>
    %c32_i32 = arith.constant 32 : i32
    %38 = vector.broadcast %c32_i32 : i32 to vector<8x64xi32>
    %39 = arith.cmpi slt, %37, %38 : vector<8x64xi32>
    %40 = arith.select %39, %36, %4 : vector<8x64xi1>, vector<8x64xf32>
    %41 = arith.select %39, %34, %6 : vector<8x64xi1>, vector<8x64xf32>
    %cst_17 = arith.constant dense<0.000000e+00> : vector<8x256xf32>
    %42 = tpu.matmul %40, %1, %cst_17 {dimension_numbers = #tpu.dot_dimension_numbers<[1], [0], [0], [1], [0, 0, 1, 1], [], []>} : vector<8x64xf32>, vector<64x256xf32>, vector<8x256xf32> -> vector<8x256xf32>
    %43 = vector.extract_strided_slice %15 {offsets = [8, 0], sizes = [8, 256], strides = [1, 1]} : vector<64x256xf32> to vector<8x256xf32>
    %44 = arith.addf %42, %43 : vector<8x256xf32>
    %45 = arith.negf %44 : vector<8x256xf32>
    %46 = math.exp %45 : vector<8x256xf32>
    %cst_18 = arith.constant 1.000000e+00 : f32
    %47 = vector.broadcast %cst_18 : f32 to vector<8x256xf32>
    %48 = arith.addf %47, %46 : vector<8x256xf32>
    %49 = arith.divf %47, %48 : vector<8x256xf32>
    %50 = vector.extract_strided_slice %49 {offsets = [0, 0], sizes = [8, 64], strides = [1, 1]} : vector<8x256xf32> to vector<8x64xf32>
    %51 = vector.extract_strided_slice %49 {offsets = [0, 64], sizes = [8, 64], strides = [1, 1]} : vector<8x256xf32> to vector<8x64xf32>
    %52 = vector.extract_strided_slice %49 {offsets = [0, 128], sizes = [8, 64], strides = [1, 1]} : vector<8x256xf32> to vector<8x64xf32>
    %53 = vector.extract_strided_slice %49 {offsets = [0, 192], sizes = [8, 64], strides = [1, 1]} : vector<8x256xf32> to vector<8x64xf32>
    %cst_19 = arith.constant 2.000000e+00 : f32
    %54 = vector.broadcast %cst_19 : f32 to vector<8x64xf32>
    %55 = arith.mulf %54, %53 : vector<8x64xf32>
    %cst_20 = arith.constant 1.000000e+00 : f32
    %56 = vector.broadcast %cst_20 : f32 to vector<8x64xf32>
    %57 = arith.subf %55, %56 : vector<8x64xf32>
    %58 = arith.mulf %51, %41 : vector<8x64xf32>
    %59 = arith.mulf %50, %57 : vector<8x64xf32>
    %60 = arith.addf %58, %59 : vector<8x64xf32>
    %61 = math.tanh %60 : vector<8x64xf32>
    %62 = arith.mulf %52, %61 : vector<8x64xf32>
    %cst_21 = arith.constant dense<0.000000e+00> : vector<8x256xf32>
    %63 = tpu.matmul %62, %1, %cst_21 {dimension_numbers = #tpu.dot_dimension_numbers<[1], [0], [0], [1], [0, 0, 1, 1], [], []>} : vector<8x64xf32>, vector<64x256xf32>, vector<8x256xf32> -> vector<8x256xf32>
    %64 = vector.extract_strided_slice %15 {offsets = [16, 0], sizes = [8, 256], strides = [1, 1]} : vector<64x256xf32> to vector<8x256xf32>
    %65 = arith.addf %63, %64 : vector<8x256xf32>
    %66 = arith.negf %65 : vector<8x256xf32>
    %67 = math.exp %66 : vector<8x256xf32>
    %cst_22 = arith.constant 1.000000e+00 : f32
    %68 = vector.broadcast %cst_22 : f32 to vector<8x256xf32>
    %69 = arith.addf %68, %67 : vector<8x256xf32>
    %70 = arith.divf %68, %69 : vector<8x256xf32>
    %71 = vector.extract_strided_slice %70 {offsets = [0, 0], sizes = [8, 64], strides = [1, 1]} : vector<8x256xf32> to vector<8x64xf32>
    %72 = vector.extract_strided_slice %70 {offsets = [0, 64], sizes = [8, 64], strides = [1, 1]} : vector<8x256xf32> to vector<8x64xf32>
    %73 = vector.extract_strided_slice %70 {offsets = [0, 128], sizes = [8, 64], strides = [1, 1]} : vector<8x256xf32> to vector<8x64xf32>
    %74 = vector.extract_strided_slice %70 {offsets = [0, 192], sizes = [8, 64], strides = [1, 1]} : vector<8x256xf32> to vector<8x64xf32>
    %cst_23 = arith.constant 2.000000e+00 : f32
    %75 = vector.broadcast %cst_23 : f32 to vector<8x64xf32>
    %76 = arith.mulf %75, %74 : vector<8x64xf32>
    %cst_24 = arith.constant 1.000000e+00 : f32
    %77 = vector.broadcast %cst_24 : f32 to vector<8x64xf32>
    %78 = arith.subf %76, %77 : vector<8x64xf32>
    %79 = arith.mulf %72, %60 : vector<8x64xf32>
    %80 = arith.mulf %71, %78 : vector<8x64xf32>
    %81 = arith.addf %79, %80 : vector<8x64xf32>
    %82 = math.tanh %81 : vector<8x64xf32>
    %83 = arith.mulf %73, %82 : vector<8x64xf32>
    %cst_25 = arith.constant dense<0.000000e+00> : vector<8x256xf32>
    %84 = tpu.matmul %83, %1, %cst_25 {dimension_numbers = #tpu.dot_dimension_numbers<[1], [0], [0], [1], [0, 0, 1, 1], [], []>} : vector<8x64xf32>, vector<64x256xf32>, vector<8x256xf32> -> vector<8x256xf32>
    %85 = vector.extract_strided_slice %15 {offsets = [24, 0], sizes = [8, 256], strides = [1, 1]} : vector<64x256xf32> to vector<8x256xf32>
    %86 = arith.addf %84, %85 : vector<8x256xf32>
    %87 = arith.negf %86 : vector<8x256xf32>
    %88 = math.exp %87 : vector<8x256xf32>
    %cst_26 = arith.constant 1.000000e+00 : f32
    %89 = vector.broadcast %cst_26 : f32 to vector<8x256xf32>
    %90 = arith.addf %89, %88 : vector<8x256xf32>
    %91 = arith.divf %89, %90 : vector<8x256xf32>
    %92 = vector.extract_strided_slice %91 {offsets = [0, 0], sizes = [8, 64], strides = [1, 1]} : vector<8x256xf32> to vector<8x64xf32>
    %93 = vector.extract_strided_slice %91 {offsets = [0, 64], sizes = [8, 64], strides = [1, 1]} : vector<8x256xf32> to vector<8x64xf32>
    %94 = vector.extract_strided_slice %91 {offsets = [0, 128], sizes = [8, 64], strides = [1, 1]} : vector<8x256xf32> to vector<8x64xf32>
    %95 = vector.extract_strided_slice %91 {offsets = [0, 192], sizes = [8, 64], strides = [1, 1]} : vector<8x256xf32> to vector<8x64xf32>
    %cst_27 = arith.constant 2.000000e+00 : f32
    %96 = vector.broadcast %cst_27 : f32 to vector<8x64xf32>
    %97 = arith.mulf %96, %95 : vector<8x64xf32>
    %cst_28 = arith.constant 1.000000e+00 : f32
    %98 = vector.broadcast %cst_28 : f32 to vector<8x64xf32>
    %99 = arith.subf %97, %98 : vector<8x64xf32>
    %100 = arith.mulf %93, %81 : vector<8x64xf32>
    %101 = arith.mulf %92, %99 : vector<8x64xf32>
    %102 = arith.addf %100, %101 : vector<8x64xf32>
    %103 = math.tanh %102 : vector<8x64xf32>
    %104 = arith.mulf %94, %103 : vector<8x64xf32>
    %cst_29 = arith.constant dense<0.000000e+00> : vector<8x256xf32>
    %105 = tpu.matmul %104, %1, %cst_29 {dimension_numbers = #tpu.dot_dimension_numbers<[1], [0], [0], [1], [0, 0, 1, 1], [], []>} : vector<8x64xf32>, vector<64x256xf32>, vector<8x256xf32> -> vector<8x256xf32>
    %106 = vector.extract_strided_slice %15 {offsets = [32, 0], sizes = [8, 256], strides = [1, 1]} : vector<64x256xf32> to vector<8x256xf32>
    %107 = arith.addf %105, %106 : vector<8x256xf32>
    %108 = arith.negf %107 : vector<8x256xf32>
    %109 = math.exp %108 : vector<8x256xf32>
    %cst_30 = arith.constant 1.000000e+00 : f32
    %110 = vector.broadcast %cst_30 : f32 to vector<8x256xf32>
    %111 = arith.addf %110, %109 : vector<8x256xf32>
    %112 = arith.divf %110, %111 : vector<8x256xf32>
    %113 = vector.extract_strided_slice %112 {offsets = [0, 0], sizes = [8, 64], strides = [1, 1]} : vector<8x256xf32> to vector<8x64xf32>
    %114 = vector.extract_strided_slice %112 {offsets = [0, 64], sizes = [8, 64], strides = [1, 1]} : vector<8x256xf32> to vector<8x64xf32>
    %115 = vector.extract_strided_slice %112 {offsets = [0, 128], sizes = [8, 64], strides = [1, 1]} : vector<8x256xf32> to vector<8x64xf32>
    %116 = vector.extract_strided_slice %112 {offsets = [0, 192], sizes = [8, 64], strides = [1, 1]} : vector<8x256xf32> to vector<8x64xf32>
    %cst_31 = arith.constant 2.000000e+00 : f32
    %117 = vector.broadcast %cst_31 : f32 to vector<8x64xf32>
    %118 = arith.mulf %117, %116 : vector<8x64xf32>
    %cst_32 = arith.constant 1.000000e+00 : f32
    %119 = vector.broadcast %cst_32 : f32 to vector<8x64xf32>
    %120 = arith.subf %118, %119 : vector<8x64xf32>
    %121 = arith.mulf %114, %102 : vector<8x64xf32>
    %122 = arith.mulf %113, %120 : vector<8x64xf32>
    %123 = arith.addf %121, %122 : vector<8x64xf32>
    %124 = math.tanh %123 : vector<8x64xf32>
    %125 = arith.mulf %115, %124 : vector<8x64xf32>
    %cst_33 = arith.constant dense<0.000000e+00> : vector<8x256xf32>
    %126 = tpu.matmul %125, %1, %cst_33 {dimension_numbers = #tpu.dot_dimension_numbers<[1], [0], [0], [1], [0, 0, 1, 1], [], []>} : vector<8x64xf32>, vector<64x256xf32>, vector<8x256xf32> -> vector<8x256xf32>
    %127 = vector.extract_strided_slice %15 {offsets = [40, 0], sizes = [8, 256], strides = [1, 1]} : vector<64x256xf32> to vector<8x256xf32>
    %128 = arith.addf %126, %127 : vector<8x256xf32>
    %129 = arith.negf %128 : vector<8x256xf32>
    %130 = math.exp %129 : vector<8x256xf32>
    %cst_34 = arith.constant 1.000000e+00 : f32
    %131 = vector.broadcast %cst_34 : f32 to vector<8x256xf32>
    %132 = arith.addf %131, %130 : vector<8x256xf32>
    %133 = arith.divf %131, %132 : vector<8x256xf32>
    %134 = vector.extract_strided_slice %133 {offsets = [0, 0], sizes = [8, 64], strides = [1, 1]} : vector<8x256xf32> to vector<8x64xf32>
    %135 = vector.extract_strided_slice %133 {offsets = [0, 64], sizes = [8, 64], strides = [1, 1]} : vector<8x256xf32> to vector<8x64xf32>
    %136 = vector.extract_strided_slice %133 {offsets = [0, 128], sizes = [8, 64], strides = [1, 1]} : vector<8x256xf32> to vector<8x64xf32>
    %137 = vector.extract_strided_slice %133 {offsets = [0, 192], sizes = [8, 64], strides = [1, 1]} : vector<8x256xf32> to vector<8x64xf32>
    %cst_35 = arith.constant 2.000000e+00 : f32
    %138 = vector.broadcast %cst_35 : f32 to vector<8x64xf32>
    %139 = arith.mulf %138, %137 : vector<8x64xf32>
    %cst_36 = arith.constant 1.000000e+00 : f32
    %140 = vector.broadcast %cst_36 : f32 to vector<8x64xf32>
    %141 = arith.subf %139, %140 : vector<8x64xf32>
    %142 = arith.mulf %135, %123 : vector<8x64xf32>
    %143 = arith.mulf %134, %141 : vector<8x64xf32>
    %144 = arith.addf %142, %143 : vector<8x64xf32>
    %145 = math.tanh %144 : vector<8x64xf32>
    %146 = arith.mulf %136, %145 : vector<8x64xf32>
    %cst_37 = arith.constant dense<0.000000e+00> : vector<8x256xf32>
    %147 = tpu.matmul %146, %1, %cst_37 {dimension_numbers = #tpu.dot_dimension_numbers<[1], [0], [0], [1], [0, 0, 1, 1], [], []>} : vector<8x64xf32>, vector<64x256xf32>, vector<8x256xf32> -> vector<8x256xf32>
    %148 = vector.extract_strided_slice %15 {offsets = [48, 0], sizes = [8, 256], strides = [1, 1]} : vector<64x256xf32> to vector<8x256xf32>
    %149 = arith.addf %147, %148 : vector<8x256xf32>
    %150 = arith.negf %149 : vector<8x256xf32>
    %151 = math.exp %150 : vector<8x256xf32>
    %cst_38 = arith.constant 1.000000e+00 : f32
    %152 = vector.broadcast %cst_38 : f32 to vector<8x256xf32>
    %153 = arith.addf %152, %151 : vector<8x256xf32>
    %154 = arith.divf %152, %153 : vector<8x256xf32>
    %155 = vector.extract_strided_slice %154 {offsets = [0, 0], sizes = [8, 64], strides = [1, 1]} : vector<8x256xf32> to vector<8x64xf32>
    %156 = vector.extract_strided_slice %154 {offsets = [0, 64], sizes = [8, 64], strides = [1, 1]} : vector<8x256xf32> to vector<8x64xf32>
    %157 = vector.extract_strided_slice %154 {offsets = [0, 128], sizes = [8, 64], strides = [1, 1]} : vector<8x256xf32> to vector<8x64xf32>
    %158 = vector.extract_strided_slice %154 {offsets = [0, 192], sizes = [8, 64], strides = [1, 1]} : vector<8x256xf32> to vector<8x64xf32>
    %cst_39 = arith.constant 2.000000e+00 : f32
    %159 = vector.broadcast %cst_39 : f32 to vector<8x64xf32>
    %160 = arith.mulf %159, %158 : vector<8x64xf32>
    %cst_40 = arith.constant 1.000000e+00 : f32
    %161 = vector.broadcast %cst_40 : f32 to vector<8x64xf32>
    %162 = arith.subf %160, %161 : vector<8x64xf32>
    %163 = arith.mulf %156, %144 : vector<8x64xf32>
    %164 = arith.mulf %155, %162 : vector<8x64xf32>
    %165 = arith.addf %163, %164 : vector<8x64xf32>
    %166 = math.tanh %165 : vector<8x64xf32>
    %167 = arith.mulf %157, %166 : vector<8x64xf32>
    %cst_41 = arith.constant dense<0.000000e+00> : vector<8x256xf32>
    %168 = tpu.matmul %167, %1, %cst_41 {dimension_numbers = #tpu.dot_dimension_numbers<[1], [0], [0], [1], [0, 0, 1, 1], [], []>} : vector<8x64xf32>, vector<64x256xf32>, vector<8x256xf32> -> vector<8x256xf32>
    %169 = vector.extract_strided_slice %15 {offsets = [56, 0], sizes = [8, 256], strides = [1, 1]} : vector<64x256xf32> to vector<8x256xf32>
    %170 = arith.addf %168, %169 : vector<8x256xf32>
    %171 = arith.negf %170 : vector<8x256xf32>
    %172 = math.exp %171 : vector<8x256xf32>
    %cst_42 = arith.constant 1.000000e+00 : f32
    %173 = vector.broadcast %cst_42 : f32 to vector<8x256xf32>
    %174 = arith.addf %173, %172 : vector<8x256xf32>
    %175 = arith.divf %173, %174 : vector<8x256xf32>
    %176 = vector.extract_strided_slice %175 {offsets = [0, 0], sizes = [8, 64], strides = [1, 1]} : vector<8x256xf32> to vector<8x64xf32>
    %177 = vector.extract_strided_slice %175 {offsets = [0, 64], sizes = [8, 64], strides = [1, 1]} : vector<8x256xf32> to vector<8x64xf32>
    %178 = vector.extract_strided_slice %175 {offsets = [0, 128], sizes = [8, 64], strides = [1, 1]} : vector<8x256xf32> to vector<8x64xf32>
    %179 = vector.extract_strided_slice %175 {offsets = [0, 192], sizes = [8, 64], strides = [1, 1]} : vector<8x256xf32> to vector<8x64xf32>
    %cst_43 = arith.constant 2.000000e+00 : f32
    %180 = vector.broadcast %cst_43 : f32 to vector<8x64xf32>
    %181 = arith.mulf %180, %179 : vector<8x64xf32>
    %cst_44 = arith.constant 1.000000e+00 : f32
    %182 = vector.broadcast %cst_44 : f32 to vector<8x64xf32>
    %183 = arith.subf %181, %182 : vector<8x64xf32>
    %184 = arith.mulf %177, %165 : vector<8x64xf32>
    %185 = arith.mulf %176, %183 : vector<8x64xf32>
    %186 = arith.addf %184, %185 : vector<8x64xf32>
    %187 = math.tanh %186 : vector<8x64xf32>
    %188 = arith.mulf %178, %187 : vector<8x64xf32>
    %cst_45 = arith.constant dense<0.000000e+00> : vector<8x256xf32>
    %189 = tpu.matmul %188, %1, %cst_45 {dimension_numbers = #tpu.dot_dimension_numbers<[1], [0], [0], [1], [0, 0, 1, 1], [], []>} : vector<8x64xf32>, vector<64x256xf32>, vector<8x256xf32> -> vector<8x256xf32>
    %190 = vector.extract_strided_slice %15 {offsets = [56, 0], sizes = [8, 256], strides = [1, 1]} : vector<64x256xf32> to vector<8x256xf32>
    %191 = arith.addf %189, %190 : vector<8x256xf32>
    %192 = arith.negf %191 : vector<8x256xf32>
    %193 = math.exp %192 : vector<8x256xf32>
    %cst_46 = arith.constant 1.000000e+00 : f32
    %194 = vector.broadcast %cst_46 : f32 to vector<8x256xf32>
    %195 = arith.addf %194, %193 : vector<8x256xf32>
    %196 = arith.divf %194, %195 : vector<8x256xf32>
    %197 = vector.extract_strided_slice %196 {offsets = [0, 0], sizes = [8, 64], strides = [1, 1]} : vector<8x256xf32> to vector<8x64xf32>
    %198 = vector.extract_strided_slice %196 {offsets = [0, 64], sizes = [8, 64], strides = [1, 1]} : vector<8x256xf32> to vector<8x64xf32>
    %199 = vector.extract_strided_slice %196 {offsets = [0, 128], sizes = [8, 64], strides = [1, 1]} : vector<8x256xf32> to vector<8x64xf32>
    %200 = vector.extract_strided_slice %196 {offsets = [0, 192], sizes = [8, 64], strides = [1, 1]} : vector<8x256xf32> to vector<8x64xf32>
    %cst_47 = arith.constant 2.000000e+00 : f32
    %201 = vector.broadcast %cst_47 : f32 to vector<8x64xf32>
    %202 = arith.mulf %201, %200 : vector<8x64xf32>
    %cst_48 = arith.constant 1.000000e+00 : f32
    %203 = vector.broadcast %cst_48 : f32 to vector<8x64xf32>
    %204 = arith.subf %202, %203 : vector<8x64xf32>
    %205 = arith.mulf %198, %186 : vector<8x64xf32>
    %206 = arith.mulf %197, %204 : vector<8x64xf32>
    %207 = arith.addf %205, %206 : vector<8x64xf32>
    %208 = math.tanh %207 : vector<8x64xf32>
    %209 = arith.mulf %199, %208 : vector<8x64xf32>
    %210 = vector.extract_strided_slice %209 {offsets = [0, 32], sizes = [8, 32], strides = [1, 1]} : vector<8x64xf32> to vector<8x32xf32>
    %cst_49 = arith.constant dense<0.000000e+00> : vector<8x128xf32>
    %211 = tpu.matmul %210, %7, %cst_49 {dimension_numbers = #tpu.dot_dimension_numbers<[1], [0], [0], [1], [0, 0, 1, 1], [], []>} : vector<8x32xf32>, vector<32x128xf32>, vector<8x128xf32> -> vector<8x128xf32>
    %212 = arith.addf %211, %8 : vector<8x128xf32>
    %cst_50 = arith.constant 0.00999999977 : f32
    %213 = vector.broadcast %cst_50 : f32 to vector<8x128xf32>
    %214 = arith.mulf %213, %212 : vector<8x128xf32>
    %215 = arith.maximumf %212, %214 : vector<8x128xf32>
    %cst_51 = arith.constant dense<0.000000e+00> : vector<8x128xf32>
    %216 = tpu.matmul %215, %9, %cst_51 {dimension_numbers = #tpu.dot_dimension_numbers<[1], [0], [0], [1], [0, 0, 1, 1], [], []>} : vector<8x128xf32>, vector<128x128xf32>, vector<8x128xf32> -> vector<8x128xf32>
    %217 = arith.addf %216, %10 : vector<8x128xf32>
    %c0_52 = arith.constant 0 : index
    %c0_53 = arith.constant 0 : index
    %218 = vector.load %arg3[%c0_52, %c0_53] : memref<8x128xf32, #tpu.memory_space<vmem>>, vector<8x128xf32>
    tpu.vector_store %arg3[%c0_52, %c0_53], %217 {strides = array<i32>} : memref<8x128xf32, #tpu.memory_space<vmem>>, vector<8x128xf32>,
    return
  }
}

</mosaic_0001>

<llo_original>
// kernel: lstm_clf_forward.1
$region0: #{lstm_clf_forward.1}
  #allocation0 [shape = 'u32[]', space=smem, size = 0x4, offset = 0x4, fixed_abs, tag = 'smem constant byte address 0x4 - core index']
  #allocation1 [shape = 'u32[144,128]{1,0:T(1,128)}', space=vmem, size = 0x12000, scoped, tag = 'internal scratch']
  %s0 = inlined_call_operand.vmem [shape: f32[8,8,64], index: 0, kind: input, shape index: {}]
  %s1 = inlined_call_operand.hbm [shape: f32[152,256], index: 1, kind: input, shape index: {}]
  %s2 = inlined_call_operand.hbm [shape: f32[176,128], index: 2, kind: input, shape index: {}]
  %s3 = inlined_call_operand.vmem [shape: f32[8,128], index: 3, kind: output, shape index: {}]
  %s4 = sld [smem:[#allocation0]]
  $region30: #{lstm_clf_forward.1} parent=0
    _
  %s6 = ssub.s32 1, %s4
  %s7 = scalar_select 0, %s6, %s4
  $region1: #{lstm_clf_forward.1} parent=0
    #allocation2 [shape = 'u8[155648]{0}', space=vmem, size = 0x26000, scoped, tag = 'input window, operand 1, single buffered']
    #allocation3 [shape = 's32[1]{0}', space=sflag, size = 0x4, scoped, tag = 'scoped memory for lstm_clf_forward.1']
    #allocation4 [shape = 'u8[90112]{0}', space=vmem, size = 0x16000, scoped, tag = 'input window, operand 2, single buffered']
    #allocation5 [shape = 's32[1]{0}', space=sflag, size = 0x4, scoped, tag = 'scoped memory for lstm_clf_forward.1']
    %8 = vsyncpa [#allocation3], 0
    %9 = vsyncpa [#allocation5], 0
    // Predicated region
    $region2: #{lstm_clf_forward.1} parent=1 // pred_check
      _
    $region3: #{lstm_clf_forward.1} parent=1 // pred_check_branch
      %11 = sbr.rel (0) target = $region5
    $region4: #{lstm_clf_forward.1} parent=1 // pred_region
      _
    $region5: #{lstm_clf_forward.1} parent=1 // pred_fallthru
      _
    // Predicated region
    $region6: #{lstm_clf_forward.1} parent=1 // pred_check
      _
    $region7: #{lstm_clf_forward.1} parent=1 // pred_check_branch
      %13 = sbr.rel (0) target = $region9
    $region8: #{lstm_clf_forward.1} parent=1 // pred_region
      %s15 = ssub.s32 4864, 4864
      %16 = vsyncadd [#allocation3], %s15
      %s17 = sshll.u32 [#allocation2], 4
      %s18 = int_to_ptr.vmem [resolvable:$true] %s17
      %23 = dma.hbm_to_vmem [thread:$0]  %s1, 4864, %s18, [#allocation3], 256, 256, 16
    $region9: #{lstm_clf_forward.1} parent=1 // pred_fallthru
      _
    // Predicated region
    $region10: #{lstm_clf_forward.1} parent=1 // pred_check
      _
    $region11: #{lstm_clf_forward.1} parent=1 // pred_check_branch
      %25 = sbr.rel (0) target = $region13
    $region12: #{lstm_clf_forward.1} parent=1 // pred_region
      %s27 = ssub.s32 2816, 2816
      %28 = vsyncadd [#allocation5], %s27
      %s29 = sshll.u32 [#allocation4], 4
      %s30 = int_to_ptr.vmem [resolvable:$true] %s29
      %35 = dma.hbm_to_vmem [thread:$0]  %s2, 2816, %s30, [#allocation5], 128, 128, 8
    $region13: #{lstm_clf_forward.1} parent=1 // pred_fallthru
      _
    // Predicated region
    $region14: #{lstm_clf_forward.1} parent=1 // pred_check
      _
    $region15: #{lstm_clf_forward.1} parent=1 // pred_check_branch
      %37 = sbr.rel (0) target = $region17
    $region16: #{lstm_clf_forward.1} parent=1 // pred_region
      %38 = dma.done [#allocation3], 4864
    $region17: #{lstm_clf_forward.1} parent=1 // pred_fallthru
      _
    // Predicated region
    $region18: #{lstm_clf_forward.1} parent=1 // pred_check
      _
    $region19: #{lstm_clf_forward.1} parent=1 // pred_check_branch
      %40 = sbr.rel (0) target = $region21
    $region20: #{lstm_clf_forward.1} parent=1 // pred_region
      %41 = dma.done [#allocation5], 2816
    $region21: #{lstm_clf_forward.1} parent=1 // pred_fallthru
      _
    %v42 = vld [vmem:[#allocation2] sm:$0xff]
    %v43 = vld [vmem:[#allocation2 + $0x8] sm:$0xff]
    %v44 = vld [vmem:[#allocation2 + $0x10] sm:$0xff]
    %v45 = vld [vmem:[#allocation2 + $0x18] sm:$0xff]
    %v46 = vld [vmem:[#allocation2 + $0x20] sm:$0xff]
    %v47 = vld [vmem:[#allocation2 + $0x28] sm:$0xff]
    %v48 = vld [vmem:[#allocation2 + $0x30] sm:$0xff]
    %v49 = vld [vmem:[#allocation2 + $0x38] sm:$0xff]
    %v50 = vld [vmem:[#allocation2 + $0x40] sm:$0xff]
    %v51 = vld [vmem:[#allocation2 + $0x48] sm:$0xff]
    %v52 = vld [vmem:[#allocation2 + $0x50] sm:$0xff]
    %v53 = vld [vmem:[#allocation2 + $0x58] sm:$0xff]
    %v54 = vld [vmem:[#allocation2 + $0x60] sm:$0xff]
    %v55 = vld [vmem:[#allocation2 + $0x68] sm:$0xff]
    %v56 = vld [vmem:[#allocation2 + $0x70] sm:$0xff]
    %v57 = vld [vmem:[#allocation2 + $0x78] sm:$0xff]
    %v58 = vld [vmem:[#allocation2 + $0x80] sm:$0xff]
    %v59 = vld [vmem:[#allocation2 + $0x88] sm:$0xff]
    %v60 = vld [vmem:[#allocation2 + $0x90] sm:$0xff]
    %v61 = vld [vmem:[#allocation2 + $0x98] sm:$0xff]
    %v62 = vld [vmem:[#allocation2 + $0xa0] sm:$0xff]
    %v63 = vld [vmem:[#allocation2 + $0xa8] sm:$0xff]
    %v64 = vld [vmem:[#allocation2 + $0xb0] sm:$0xff]
    %v65 = vld [vmem:[#allocation2 + $0xb8] sm:$0xff]
    %v66 = vld [vmem:[#allocation2 + $0xc0] sm:$0xff]
    %v67 = vld [vmem:[#allocation2 + $0xc8] sm:$0xff]
    %v68 = vld [vmem:[#allocation2 + $0xd0] sm:$0xff]
    %v69 = vld [vmem:[#allocation2 + $0xd8] sm:$0xff]
    %v70 = vld [vmem:[#allocation2 + $0xe0] sm:$0xff]
    %v71 = vld [vmem:[#allocation2 + $0xe8] sm:$0xff]
    %v72 = vld [vmem:[#allocation2 + $0xf0] sm:$0xff]
    %v73 = vld [vmem:[#allocation2 + $0xf8] sm:$0xff]
    %s74 = scalar_lea.vmem [#allocation2], 256
    %v75 = vld [vmem:[%s74] ss:$8 sm:$0x3]
    %v76 = vld [vmem:[#allocation2 + $0x110] sm:$0xff]
    %v77 = vld [vmem:[#allocation2 + $0x120] sm:$0xff]
    %v78 = vld [vmem:[#allocation4] sm:$0xff]
    %v79 = vld [vmem:[#allocation4 + $0x8] sm:$0xff]
    %v80 = vld [vmem:[#allocation4 + $0x10] sm:$0xff]
    %v81 = vld [vmem:[#allocation4 + $0x18] sm:$0xff]
    %v82 = vld [vmem:[#allocation4 + $0x20] sm:$0xff]
    %v83 = vld [vmem:[#allocation4 + $0x28] sm:$0xff]
    %v84 = vld [vmem:[#allocation4 + $0x30] sm:$0xff]
    %v85 = vld [vmem:[#allocation4 + $0x38] sm:$0xff]
    %v86 = vld [vmem:[#allocation4 + $0x40] sm:$0xff]
    %v87 = vld [vmem:[#allocation4 + $0x48] sm:$0xff]
    %v88 = vld [vmem:[#allocation4 + $0x50] sm:$0xff]
    %v89 = vld [vmem:[#allocation4 + $0x58] sm:$0xff]
    %v90 = vld [vmem:[#allocation4 + $0x60] sm:$0xff]
    %v91 = vld [vmem:[#allocation4 + $0x68] sm:$0xff]
    %v92 = vld [vmem:[#allocation4 + $0x70] sm:$0xff]
    %v93 = vld [vmem:[#allocation4 + $0x78] sm:$0xff]
    %v94 = vld [vmem:[#allocation4 + $0x80] sm:$0xff]
    %v95 = vld [vmem:[#allocation4 + $0x88] sm:$0xff]
    %v96 = vld [vmem:[#allocation4 + $0x90] sm:$0xff]
    %v97 = vld [vmem:[#allocation4 + $0x98] sm:$0xff]
    %v98 = vld [vmem:[#allocation4 + $0xa0] sm:$0xff]
    %v99 = vld [vmem:[#allocation4 + $0xa8] sm:$0xff]
    %v100 = vld [vmem:[%s0] sm:$0xff]
    %v101 = vld [vmem:[%s0 + $0x8] sm:$0xff]
    %v102 = vld [vmem:[%s0 + $0x10] sm:$0xff]
    %v103 = vld [vmem:[%s0 + $0x18] sm:$0xff]
    %v104 = vld [vmem:[%s0 + $0x20] sm:$0xff]
    %v105 = vld [vmem:[%s0 + $0x28] sm:$0xff]
    %v106 = vld [vmem:[%s0 + $0x30] sm:$0xff]
    %v107 = vld [vmem:[%s0 + $0x38] sm:$0xff]
    %v109 = vlaneseq
    %v110 = vshrl.u32 %v109, 7
    %v111 = vsub.s32 0, %v110
    %v112 = vrot.slane %v75, %v111
    %v113 = vlaneseq
    %v114 = vshrl.u32 %v113, 7
    %v115 = vsub.s32 1, %v114
    %v116 = vrot.slane %v75, %v115
    %vm119 = vcmask 523264
    %v121 = vsel %vm119, %v100, 0
    %v124 = vsel %vm119, %v101, 0
    %v127 = vsel %vm119, %v102, 0
    %v130 = vsel %vm119, %v103, 0
    %v133 = vsel %vm119, %v104, 0
    %v136 = vsel %vm119, %v105, 0
    %v139 = vsel %vm119, %v106, 0
    %v142 = vsel %vm119, %v107, 0
    %144 = vmatprep.subr.mxu0 %v43
    %145 = vmatpush1.msra.mxu0 %v42
    %146 = vmatprep.subr.mxu0 %v45
    %147 = vmatpush1.msra.mxu0 %v44
    %148 = vmatprep.subr.mxu0 %v47
    %149 = vmatpush1.msra.mxu0 %v46
    %150 = vmatprep.subr.mxu0 %v49
    %151 = vmatpush1.msra.mxu0 %v48
    %152 = vmatprep.subr.mxu0 %v51
    %153 = vmatpush1.msra.mxu0 %v50
    %154 = vmatprep.subr.mxu0 %v53
    %155 = vmatpush1.msra.mxu0 %v52
    %156 = vmatprep.subr.mxu0 %v55
    %157 = vmatpush1.msra.mxu0 %v54
    %158 = vmatprep.subr.mxu0 %v57
    %159 = vmatpush1.msra.mxu0 %v56
    %160 = vmatprep.subr.mxu0 0.0
    %161 = vmatpush1.msra.mxu0 0.0
    %162 = vmatprep.subr.mxu0 0.0
    %163 = vmatpush1.msra.mxu0 0.0
    %164 = vmatprep.subr.mxu0 0.0
    %165 = vmatpush1.msra.mxu0 0.0
    %166 = vmatprep.subr.mxu0 0.0
    %167 = vmatpush1.msra.mxu0 0.0
    %168 = vmatprep.subr.mxu0 0.0
    %169 = vmatpush1.msra.mxu0 0.0
    %170 = vmatprep.subr.mxu0 0.0
    %171 = vmatpush1.msra.mxu0 0.0
    %172 = vmatprep.subr.mxu0 0.0
    %173 = vmatpush1.msra.mxu0 0.0
    %174 = vmatprep.subr.mxu0 0.0
    %175 = vmatpush1.msra.mxu0 0.0
    %176 = vmatprep.subr.mxu0 0.0
    %177 = vmatpush1.msra.mxu0 0.0
    %178 = vmatprep.subr.mxu0 0.0
    %179 = vmatpush1.msra.mxu0 0.0
    %180 = vmatprep.subr.mxu0 0.0
    %181 = vmatpush1.msra.mxu0 0.0
    %182 = vmatprep.subr.mxu0 0.0
    %183 = vmatpush1.msra.mxu0 0.0
    %184 = vmatprep.subr.mxu0 0.0
    %185 = vmatpush1.msra.mxu0 0.0
    %186 = vmatprep.subr.mxu0 0.0
    %187 = vmatpush1.msra.mxu0 0.0
    %188 = vmatprep.subr.mxu0 0.0
    %189 = vmatpush1.msra.mxu0 0.0
    %190 = vmatprep.subr.mxu0 0.0
    %191 = vmatpush1.msra.mxu0 0.0
    %192 = vmatprep.subr.mxu0 0.0
    %193 = vmatpush1.msra.mxu0 0.0
    %194 = vmatprep.subr.mxu0 0.0
    %195 = vmatpush1.msra.mxu0 0.0
    %196 = vmatprep.subr.mxu0 0.0
    %197 = vmatpush1.msra.mxu0 0.0
    %198 = vmatprep.subr.mxu0 0.0
    %199 = vmatpush1.msra.mxu0 0.0
    %200 = vmatprep.subr.mxu0 0.0
    %201 = vmatpush1.msra.mxu0 0.0
    %202 = vmatprep.subr.mxu0 0.0
    %203 = vmatpush1.msra.mxu0 0.0
    %204 = vmatprep.subr.mxu0 0.0
    %205 = vmatpush1.msra.mxu0 0.0
    %206 = vmatprep.subr.mxu0 0.0
    %207 = vmatpush1.msra.mxu0 0.0
    %208 = vmatprep.mubr.f32.mxu0 0.0
    %209 = vmatmul.mubr.f32.gmra.mrb[0].mxu0 %v121
    %v210 = vpop.f32.mrb[0].mxu0
    %v211 = vadd.f32 %v112, %v210
    %v212 = vpop.f32.mrb[0].mxu0
    %v213 = vadd.f32 %v116, %v212
    %214 = vmatprep.mubr.f32.mxu0 0.0
    %215 = vmatmul.mubr.f32.gmra.mrb[0].mxu0 %v124
    %v216 = vpop.f32.mrb[0].mxu0
    %v217 = vadd.f32 %v112, %v216
    %v218 = vpop.f32.mrb[0].mxu0
    %v219 = vadd.f32 %v116, %v218
    %220 = vmatprep.mubr.f32.mxu0 0.0
    %221 = vmatmul.mubr.f32.gmra.mrb[0].mxu0 %v127
    %v222 = vpop.f32.mrb[0].mxu0
    %v223 = vadd.f32 %v112, %v222
    %v224 = vpop.f32.mrb[0].mxu0
    %v225 = vadd.f32 %v116, %v224
    %226 = vmatprep.mubr.f32.mxu0 0.0
    %227 = vmatmul.mubr.f32.gmra.mrb[0].mxu0 %v130
    %v228 = vpop.f32.mrb[0].mxu0
    %v229 = vadd.f32 %v112, %v228
    %v230 = vpop.f32.mrb[0].mxu0
    %v231 = vadd.f32 %v116, %v230
    %232 = vmatprep.mubr.f32.mxu0 0.0
    %233 = vmatmul.mubr.f32.gmra.mrb[0].mxu0 %v133
    %v234 = vpop.f32.mrb[0].mxu0
    %v235 = vadd.f32 %v112, %v234
    %v236 = vpop.f32.mrb[0].mxu0
    %v237 = vadd.f32 %v116, %v236
    %238 = vmatprep.mubr.f32.mxu0 0.0
    %239 = vmatmul.mubr.f32.gmra.mrb[0].mxu0 %v136
    %v240 = vpop.f32.mrb[0].mxu0
    %v241 = vadd.f32 %v112, %v240
    %v242 = vpop.f32.mrb[0].mxu0
    %v243 = vadd.f32 %v116, %v242
    %244 = vmatprep.mubr.f32.mxu0 0.0
    %245 = vmatmul.mubr.f32.gmra.mrb[0].mxu0 %v139
    %v246 = vpop.f32.mrb[0].mxu0
    %v247 = vadd.f32 %v112, %v246
    %v248 = vpop.f32.mrb[0].mxu0
    %v249 = vadd.f32 %v116, %v248
    %250 = vmatprep.mubr.f32.mxu0 0.0
    %251 = vmatmul.mubr.f32.gmra.mrb[0].mxu0 %v142
    %v252 = vpop.f32.mrb[0].mxu0
    %v253 = vadd.f32 %v112, %v252
    %v254 = vpop.f32.mrb[0].mxu0
    %v255 = vadd.f32 %v116, %v254
    %256 = vdwg.mxu0
    %v258 = vsel %vm119, %v76, 0
    %260 = vmatprep.subr.mxu0 %v59
    %261 = vmatpush1.msra.mxu0 %v58
    %262 = vmatprep.subr.mxu0 %v61
    %263 = vmatpush1.msra.mxu0 %v60
    %264 = vmatprep.subr.mxu0 %v63
    %265 = vmatpush1.msra.mxu0 %v62
    %266 = vmatprep.subr.mxu0 %v65
    %267 = vmatpush1.msra.mxu0 %v64
    %268 = vmatprep.subr.mxu0 %v67
    %269 = vmatpush1.msra.mxu0 %v66
    %270 = vmatprep.subr.mxu0 %v69
    %271 = vmatpush1.msra.mxu0 %v68
    %272 = vmatprep.subr.mxu0 %v71
    %273 = vmatpush1.msra.mxu0 %v70
    %274 = vmatprep.subr.mxu0 %v73
    %275 = vmatpush1.msra.mxu0 %v72
    %276 = vmatprep.subr.mxu0 0.0
    %277 = vmatpush1.msra.mxu0 0.0
    %278 = vmatprep.subr.mxu0 0.0
    %279 = vmatpush1.msra.mxu0 0.0
    %280 = vmatprep.subr.mxu0 0.0
    %281 = vmatpush1.msra.mxu0 0.0
    %282 = vmatprep.subr.mxu0 0.0
    %283 = vmatpush1.msra.mxu0 0.0
    %284 = vmatprep.subr.mxu0 0.0
    %285 = vmatpush1.msra.mxu0 0.0
    %286 = vmatprep.subr.mxu0 0.0
    %287 = vmatpush1.msra.mxu0 0.0
    %288 = vmatprep.subr.mxu0 0.0
    %289 = vmatpush1.msra.mxu0 0.0
    %290 = vmatprep.subr.mxu0 0.0
    %291 = vmatpush1.msra.mxu0 0.0
    %292 = vmatprep.subr.mxu0 0.0
    %293 = vmatpush1.msra.mxu0 0.0
    %294 = vmatprep.subr.mxu0 0.0
    %295 = vmatpush1.msra.mxu0 0.0
    %296 = vmatprep.subr.mxu0 0.0
    %297 = vmatpush1.msra.mxu0 0.0
    %298 = vmatprep.subr.mxu0 0.0
    %299 = vmatpush1.msra.mxu0 0.0
    %300 = vmatprep.subr.mxu0 0.0
    %301 = vmatpush1.msra.mxu0 0.0
    %302 = vmatprep.subr.mxu0 0.0
    %303 = vmatpush1.msra.mxu0 0.0
    %304 = vmatprep.subr.mxu0 0.0
    %305 = vmatpush1.msra.mxu0 0.0
    %306 = vmatprep.subr.mxu0 0.0
    %307 = vmatpush1.msra.mxu0 0.0
    %308 = vmatprep.subr.mxu0 0.0
    %309 = vmatpush1.msra.mxu0 0.0
    %310 = vmatprep.subr.mxu0 0.0
    %311 = vmatpush1.msra.mxu0 0.0
    %312 = vmatprep.subr.mxu0 0.0
    %313 = vmatpush1.msra.mxu0 0.0
    %314 = vmatprep.subr.mxu0 0.0
    %315 = vmatpush1.msra.mxu0 0.0
    %316 = vmatprep.subr.mxu0 0.0
    %317 = vmatpush1.msra.mxu0 0.0
    %318 = vmatprep.subr.mxu0 0.0
    %319 = vmatpush1.msra.mxu0 0.0
    %320 = vmatprep.subr.mxu0 0.0
    %321 = vmatpush1.msra.mxu0 0.0
    %322 = vmatprep.subr.mxu0 0.0
    %323 = vmatpush1.msra.mxu0 0.0
    %324 = vmatprep.mubr.f32.mxu0 0.0
    %325 = vmatmul.mubr.f32.gmra.mrb[0].mxu0 %v258
    %v326 = vpop.f32.mrb[0].mxu0
    %v327 = vadd.f32 %v211, %v326
    %v328 = vpop.f32.mrb[0].mxu0
    %v329 = vadd.f32 %v213, %v328
    %330 = vdwg.mxu0
    %v331 = vxor.u32 %v327, 2147483648
    %v332 = vxor.u32 %v329, 2147483648
    %v333 = vmul.f32 %v331, 1.442695
    %v334 = vpow.pop %v333
    %v335 = vmul.f32 %v332, 1.442695
    %v336 = vpow.pop %v335
    %v337 = vadd.f32 %v334, 1.0
    %v338 = vadd.f32 %v336, 1.0
    %v339 = vrcp.pop %v337
    %v340 = vmul.f32 1.0, %v339
    %v341 = vrcp.pop %v338
    %v342 = vmul.f32 1.0, %v341
    %v343 = vmul.f32 %v342, 2.0
    %v344 = vsub.f32 %v343, 1.0
    %346 = vrot.lane.b32.xlu0 %v77, 64
    %v347 = vpop.permute.xlu0 %346
    %v349 = vmul.f32 %v340, %v347
    %351 = vrot.lane.b32.xlu0 %v344, 64
    %v352 = vpop.permute.xlu0 %351
    %v354 = vmul.f32 %v340, %v352
    %356 = vrot.lane.b32.xlu0 %v354, 64
    %v357 = vpop.permute.xlu0 %356
    %v359 = vadd.f32 %v349, %v357
    %v360 = vtanh.pop %v359
    %362 = vrot.lane.b32.xlu0 %v360, 64
    %v363 = vpop.permute.xlu0 %362
    %v365 = vmul.f32 %v342, %v363
    %v366 = vlaneseq
    %v367 = vand.u32 %v366, 127
    %vm368 = vcmp.lt.s32.totalorder %v367, 32
    %v369 = vsel %vm368, %v365, %v76
    %371 = vrot.lane.b32.xlu0 %v359, 64
    %v372 = vpop.permute.xlu0 %371
    %v374 = vsel %vm368, %v372, %v77
    %v376 = vsel %vm119, %v369, 0
    %378 = vmatprep.subr.mxu0 %v59
    %379 = vmatpush1.msra.mxu0 %v58
    %380 = vmatprep.subr.mxu0 %v61
    %381 = vmatpush1.msra.mxu0 %v60
    %382 = vmatprep.subr.mxu0 %v63
    %383 = vmatpush1.msra.mxu0 %v62
    %384 = vmatprep.subr.mxu0 %v65
    %385 = vmatpush1.msra.mxu0 %v64
    %386 = vmatprep.subr.mxu0 %v67
    %387 = vmatpush1.msra.mxu0 %v66
    %388 = vmatprep.subr.mxu0 %v69
    %389 = vmatpush1.msra.mxu0 %v68
    %390 = vmatprep.subr.mxu0 %v71
    %391 = vmatpush1.msra.mxu0 %v70
    %392 = vmatprep.subr.mxu0 %v73
    %393 = vmatpush1.msra.mxu0 %v72
    %394 = vmatprep.subr.mxu0 0.0
    %395 = vmatpush1.msra.mxu0 0.0
    %396 = vmatprep.subr.mxu0 0.0
    %397 = vmatpush1.msra.mxu0 0.0
    %398 = vmatprep.subr.mxu0 0.0
    %399 = vmatpush1.msra.mxu0 0.0
    %400 = vmatprep.subr.mxu0 0.0
    %401 = vmatpush1.msra.mxu0 0.0
    %402 = vmatprep.subr.mxu0 0.0
    %403 = vmatpush1.msra.mxu0 0.0
    %404 = vmatprep.subr.mxu0 0.0
    %405 = vmatpush1.msra.mxu0 0.0
    %406 = vmatprep.subr.mxu0 0.0
    %407 = vmatpush1.msra.mxu0 0.0
    %408 = vmatprep.subr.mxu0 0.0
    %409 = vmatpush1.msra.mxu0 0.0
    %410 = vmatprep.subr.mxu0 0.0
    %411 = vmatpush1.msra.mxu0 0.0
    %412 = vmatprep.subr.mxu0 0.0
    %413 = vmatpush1.msra.mxu0 0.0
    %414 = vmatprep.subr.mxu0 0.0
    %415 = vmatpush1.msra.mxu0 0.0
    %416 = vmatprep.subr.mxu0 0.0
    %417 = vmatpush1.msra.mxu0 0.0
    %418 = vmatprep.subr.mxu0 0.0
    %419 = vmatpush1.msra.mxu0 0.0
    %420 = vmatprep.subr.mxu0 0.0
    %421 = vmatpush1.msra.mxu0 0.0
    %422 = vmatprep.subr.mxu0 0.0
    %423 = vmatpush1.msra.mxu0 0.0
    %424 = vmatprep.subr.mxu0 0.0
    %425 = vmatpush1.msra.mxu0 0.0
    %426 = vmatprep.subr.mxu0 0.0
    %427 = vmatpush1.msra.mxu0 0.0
    %428 = vmatprep.subr.mxu0 0.0
    %429 = vmatpush1.msra.mxu0 0.0
    %430 = vmatprep.subr.mxu0 0.0
    %431 = vmatpush1.msra.mxu0 0.0
    %432 = vmatprep.subr.mxu0 0.0
    %433 = vmatpush1.msra.mxu0 0.0
    %434 = vmatprep.subr.mxu0 0.0
    %435 = vmatpush1.msra.mxu0 0.0
    %436 = vmatprep.subr.mxu0 0.0
    %437 = vmatpush1.msra.mxu0 0.0
    %438 = vmatprep.subr.mxu0 0.0
    %439 = vmatpush1.msra.mxu0 0.0
    %440 = vmatprep.subr.mxu0 0.0
    %441 = vmatpush1.msra.mxu0 0.0
    %442 = vmatprep.mubr.f32.mxu0 0.0
    %443 = vmatmul.mubr.f32.gmra.mrb[0].mxu0 %v376
    %v444 = vpop.f32.mrb[0].mxu0
    %v445 = vadd.f32 %v217, %v444
    %v446 = vpop.f32.mrb[0].mxu0
    %v447 = vadd.f32 %v219, %v446
    %448 = vdwg.mxu0
    %v449 = vxor.u32 %v445, 2147483648
    %v450 = vxor.u32 %v447, 2147483648
    %v451 = vmul.f32 %v449, 1.442695
    %v452 = vpow.pop %v451
    %v453 = vmul.f32 %v450, 1.442695
    %v454 = vpow.pop %v453
    %v455 = vadd.f32 %v452, 1.0
    %v456 = vadd.f32 %v454, 1.0
    %v457 = vrcp.pop %v455
    %v458 = vmul.f32 1.0, %v457
    %v459 = vrcp.pop %v456
    %v460 = vmul.f32 1.0, %v459
    %v461 = vmul.f32 %v460, 2.0
    %v462 = vsub.f32 %v461, 1.0
    %464 = vrot.lane.b32.xlu0 %v374, 64
    %v465 = vpop.permute.xlu0 %464
    %v467 = vmul.f32 %v458, %v465
    %469 = vrot.lane.b32.xlu0 %v462, 64
    %v470 = vpop.permute.xlu0 %469
    %v472 = vmul.f32 %v458, %v470
    %474 = vrot.lane.b32.xlu0 %v472, 64
    %v475 = vpop.permute.xlu0 %474
    %v477 = vadd.f32 %v467, %v475
    %v478 = vtanh.pop %v477
    %480 = vrot.lane.b32.xlu0 %v478, 64
    %v481 = vpop.permute.xlu0 %480
    %v483 = vmul.f32 %v460, %v481
    %v485 = vsel %vm119, %v483, 0
    %487 = vmatprep.subr.mxu0 %v59
    %488 = vmatpush1.msra.mxu0 %v58
    %489 = vmatprep.subr.mxu0 %v61
    %490 = vmatpush1.msra.mxu0 %v60
    %491 = vmatprep.subr.mxu0 %v63
    %492 = vmatpush1.msra.mxu0 %v62
    %493 = vmatprep.subr.mxu0 %v65
    %494 = vmatpush1.msra.mxu0 %v64
    %495 = vmatprep.subr.mxu0 %v67
    %496 = vmatpush1.msra.mxu0 %v66
    %497 = vmatprep.subr.mxu0 %v69
    %498 = vmatpush1.msra.mxu0 %v68
    %499 = vmatprep.subr.mxu0 %v71
    %500 = vmatpush1.msra.mxu0 %v70
    %501 = vmatprep.subr.mxu0 %v73
    %502 = vmatpush1.msra.mxu0 %v72
    %503 = vmatprep.subr.mxu0 0.0
    %504 = vmatpush1.msra.mxu0 0.0
    %505 = vmatprep.subr.mxu0 0.0
    %506 = vmatpush1.msra.mxu0 0.0
    %507 = vmatprep.subr.mxu0 0.0
    %508 = vmatpush1.msra.mxu0 0.0
    %509 = vmatprep.subr.mxu0 0.0
    %510 = vmatpush1.msra.mxu0 0.0
    %511 = vmatprep.subr.mxu0 0.0
    %512 = vmatpush1.msra.mxu0 0.0
    %513 = vmatprep.subr.mxu0 0.0
    %514 = vmatpush1.msra.mxu0 0.0
    %515 = vmatprep.subr.mxu0 0.0
    %516 = vmatpush1.msra.mxu0 0.0
    %517 = vmatprep.subr.mxu0 0.0
    %518 = vmatpush1.msra.mxu0 0.0
    %519 = vmatprep.subr.mxu0 0.0
    %520 = vmatpush1.msra.mxu0 0.0
    %521 = vmatprep.subr.mxu0 0.0
    %522 = vmatpush1.msra.mxu0 0.0
    %523 = vmatprep.subr.mxu0 0.0
    %524 = vmatpush1.msra.mxu0 0.0
    %525 = vmatprep.subr.mxu0 0.0
    %526 = vmatpush1.msra.mxu0 0.0
    %527 = vmatprep.subr.mxu0 0.0
    %528 = vmatpush1.msra.mxu0 0.0
    %529 = vmatprep.subr.mxu0 0.0
    %530 = vmatpush1.msra.mxu0 0.0
    %531 = vmatprep.subr.mxu0 0.0
    %532 = vmatpush1.msra.mxu0 0.0
    %533 = vmatprep.subr.mxu0 0.0
    %534 = vmatpush1.msra.mxu0 0.0
    %535 = vmatprep.subr.mxu0 0.0
    %536 = vmatpush1.msra.mxu0 0.0
    %537 = vmatprep.subr.mxu0 0.0
    %538 = vmatpush1.msra.mxu0 0.0
    %539 = vmatprep.subr.mxu0 0.0
    %540 = vmatpush1.msra.mxu0 0.0
    %541 = vmatprep.subr.mxu0 0.0
    %542 = vmatpush1.msra.mxu0 0.0
    %543 = vmatprep.subr.mxu0 0.0
    %544 = vmatpush1.msra.mxu0 0.0
    %545 = vmatprep.subr.mxu0 0.0
    %546 = vmatpush1.msra.mxu0 0.0
    %547 = vmatprep.subr.mxu0 0.0
    %548 = vmatpush1.msra.mxu0 0.0
    %549 = vmatprep.subr.mxu0 0.0
    %550 = vmatpush1.msra.mxu0 0.0
    %551 = vmatprep.mubr.f32.mxu0 0.0
    %552 = vmatmul.mubr.f32.gmra.mrb[0].mxu0 %v485
    %v553 = vpop.f32.mrb[0].mxu0
    %v554 = vadd.f32 %v223, %v553
    %v555 = vpop.f32.mrb[0].mxu0
    %v556 = vadd.f32 %v225, %v555
    %557 = vdwg.mxu0
    %v558 = vxor.u32 %v554, 2147483648
    %v559 = vxor.u32 %v556, 2147483648
    %v560 = vmul.f32 %v558, 1.442695
    %v561 = vpow.pop %v560
    %v562 = vmul.f32 %v559, 1.442695
    %v563 = vpow.pop %v562
    %v564 = vadd.f32 %v561, 1.0
    %v565 = vadd.f32 %v563, 1.0
    %v566 = vrcp.pop %v564
    %v567 = vmul.f32 1.0, %v566
    %v568 = vrcp.pop %v565
    %v569 = vmul.f32 1.0, %v568
    %v570 = vmul.f32 %v569, 2.0
    %v571 = vsub.f32 %v570, 1.0
    %v572 = vmul.f32 %v567, %v477
    %574 = vrot.lane.b32.xlu0 %v571, 64
    %v575 = vpop.permute.xlu0 %574
    %v577 = vmul.f32 %v567, %v575
    %579 = vrot.lane.b32.xlu0 %v577, 64
    %v580 = vpop.permute.xlu0 %579
    %v582 = vadd.f32 %v572, %v580
    %v583 = vtanh.pop %v582
    %585 = vrot.lane.b32.xlu0 %v583, 64
    %v586 = vpop.permute.xlu0 %585
    %v588 = vmul.f32 %v569, %v586
    %v590 = vsel %vm119, %v588, 0
    %592 = vmatprep.subr.mxu0 %v59
    %593 = vmatpush1.msra.mxu0 %v58
    %594 = vmatprep.subr.mxu0 %v61
    %595 = vmatpush1.msra.mxu0 %v60
    %596 = vmatprep.subr.mxu0 %v63
    %597 = vmatpush1.msra.mxu0 %v62
    %598 = vmatprep.subr.mxu0 %v65
    %599 = vmatpush1.msra.mxu0 %v64
    %600 = vmatprep.subr.mxu0 %v67
    %601 = vmatpush1.msra.mxu0 %v66
    %602 = vmatprep.subr.mxu0 %v69
    %603 = vmatpush1.msra.mxu0 %v68
    %604 = vmatprep.subr.mxu0 %v71
    %605 = vmatpush1.msra.mxu0 %v70
    %606 = vmatprep.subr.mxu0 %v73
    %607 = vmatpush1.msra.mxu0 %v72
    %608 = vmatprep.subr.mxu0 0.0
    %609 = vmatpush1.msra.mxu0 0.0
    %610 = vmatprep.subr.mxu0 0.0
    %611 = vmatpush1.msra.mxu0 0.0
    %612 = vmatprep.subr.mxu0 0.0
    %613 = vmatpush1.msra.mxu0 0.0
    %614 = vmatprep.subr.mxu0 0.0
    %615 = vmatpush1.msra.mxu0 0.0
    %616 = vmatprep.subr.mxu0 0.0
    %617 = vmatpush1.msra.mxu0 0.0
    %618 = vmatprep.subr.mxu0 0.0
    %619 = vmatpush1.msra.mxu0 0.0
    %620 = vmatprep.subr.mxu0 0.0
    %621 = vmatpush1.msra.mxu0 0.0
    %622 = vmatprep.subr.mxu0 0.0
    %623 = vmatpush1.msra.mxu0 0.0
    %624 = vmatprep.subr.mxu0 0.0
    %625 = vmatpush1.msra.mxu0 0.0
    %626 = vmatprep.subr.mxu0 0.0
    %627 = vmatpush1.msra.mxu0 0.0
    %628 = vmatprep.subr.mxu0 0.0
    %629 = vmatpush1.msra.mxu0 0.0
    %630 = vmatprep.subr.mxu0 0.0
    %631 = vmatpush1.msra.mxu0 0.0
    %632 = vmatprep.subr.mxu0 0.0
    %633 = vmatpush1.msra.mxu0 0.0
    %634 = vmatprep.subr.mxu0 0.0
    %635 = vmatpush1.msra.mxu0 0.0
    %636 = vmatprep.subr.mxu0 0.0
    %637 = vmatpush1.msra.mxu0 0.0
    %638 = vmatprep.subr.mxu0 0.0
    %639 = vmatpush1.msra.mxu0 0.0
    %640 = vmatprep.subr.mxu0 0.0
    %641 = vmatpush1.msra.mxu0 0.0
    %642 = vmatprep.subr.mxu0 0.0
    %643 = vmatpush1.msra.mxu0 0.0
    %644 = vmatprep.subr.mxu0 0.0
    %645 = vmatpush1.msra.mxu0 0.0
    %646 = vmatprep.subr.mxu0 0.0
    %647 = vmatpush1.msra.mxu0 0.0
    %648 = vmatprep.subr.mxu0 0.0
    %649 = vmatpush1.msra.mxu0 0.0
    %650 = vmatprep.subr.mxu0 0.0
    %651 = vmatpush1.msra.mxu0 0.0
    %652 = vmatprep.subr.mxu0 0.0
    %653 = vmatpush1.msra.mxu0 0.0
    %654 = vmatprep.subr.mxu0 0.0
    %655 = vmatpush1.msra.mxu0 0.0
    %656 = vmatprep.mubr.f32.mxu0 0.0
    %657 = vmatmul.mubr.f32.gmra.mrb[0].mxu0 %v590
    %v658 = vpop.f32.mrb[0].mxu0
    %v659 = vadd.f32 %v229, %v658
    %v660 = vpop.f32.mrb[0].mxu0
    %v661 = vadd.f32 %v231, %v660
    %662 = vdwg.mxu0
    %v663 = vxor.u32 %v659, 2147483648
    %v664 = vxor.u32 %v661, 2147483648
    %v665 = vmul.f32 %v663, 1.442695
    %v666 = vpow.pop %v665
    %v667 = vmul.f32 %v664, 1.442695
    %v668 = vpow.pop %v667
    %v669 = vadd.f32 %v666, 1.0
    %v670 = vadd.f32 %v668, 1.0
    %v671 = vrcp.pop %v669
    %v672 = vmul.f32 1.0, %v671
    %v673 = vrcp.pop %v670
    %v674 = vmul.f32 1.0, %v673
    %v675 = vmul.f32 %v674, 2.0
    %v676 = vsub.f32 %v675, 1.0
    %v677 = vmul.f32 %v672, %v582
    %679 = vrot.lane.b32.xlu0 %v676, 64
    %v680 = vpop.permute.xlu0 %679
    %v682 = vmul.f32 %v672, %v680
    %684 = vrot.lane.b32.xlu0 %v682, 64
    %v685 = vpop.permute.xlu0 %684
    %v687 = vadd.f32 %v677, %v685
    %v688 = vtanh.pop %v687
    %690 = vrot.lane.b32.xlu0 %v688, 64
    %v691 = vpop.permute.xlu0 %690
    %v693 = vmul.f32 %v674, %v691
    %v695 = vsel %vm119, %v693, 0
    %697 = vmatprep.subr.mxu0 %v59
    %698 = vmatpush1.msra.mxu0 %v58
    %699 = vmatprep.subr.mxu0 %v61
    %700 = vmatpush1.msra.mxu0 %v60
    %701 = vmatprep.subr.mxu0 %v63
    %702 = vmatpush1.msra.mxu0 %v62
    %703 = vmatprep.subr.mxu0 %v65
    %704 = vmatpush1.msra.mxu0 %v64
    %705 = vmatprep.subr.mxu0 %v67
    %706 = vmatpush1.msra.mxu0 %v66
    %707 = vmatprep.subr.mxu0 %v69
    %708 = vmatpush1.msra.mxu0 %v68
    %709 = vmatprep.subr.mxu0 %v71
    %710 = vmatpush1.msra.mxu0 %v70
    %711 = vmatprep.subr.mxu0 %v73
    %712 = vmatpush1.msra.mxu0 %v72
    %713 = vmatprep.subr.mxu0 0.0
    %714 = vmatpush1.msra.mxu0 0.0
    %715 = vmatprep.subr.mxu0 0.0
    %716 = vmatpush1.msra.mxu0 0.0
    %717 = vmatprep.subr.mxu0 0.0
    %718 = vmatpush1.msra.mxu0 0.0
    %719 = vmatprep.subr.mxu0 0.0
    %720 = vmatpush1.msra.mxu0 0.0
    %721 = vmatprep.subr.mxu0 0.0
    %722 = vmatpush1.msra.mxu0 0.0
    %723 = vmatprep.subr.mxu0 0.0
    %724 = vmatpush1.msra.mxu0 0.0
    %725 = vmatprep.subr.mxu0 0.0
    %726 = vmatpush1.msra.mxu0 0.0
    %727 = vmatprep.subr.mxu0 0.0
    %728 = vmatpush1.msra.mxu0 0.0
    %729 = vmatprep.subr.mxu0 0.0
    %730 = vmatpush1.msra.mxu0 0.0
    %731 = vmatprep.subr.mxu0 0.0
    %732 = vmatpush1.msra.mxu0 0.0
    %733 = vmatprep.subr.mxu0 0.0
    %734 = vmatpush1.msra.mxu0 0.0
    %735 = vmatprep.subr.mxu0 0.0
    %736 = vmatpush1.msra.mxu0 0.0
    %737 = vmatprep.subr.mxu0 0.0
    %738 = vmatpush1.msra.mxu0 0.0
    %739 = vmatprep.subr.mxu0 0.0
    %740 = vmatpush1.msra.mxu0 0.0
    %741 = vmatprep.subr.mxu0 0.0
    %742 = vmatpush1.msra.mxu0 0.0
    %743 = vmatprep.subr.mxu0 0.0
    %744 = vmatpush1.msra.mxu0 0.0
    %745 = vmatprep.subr.mxu0 0.0
    %746 = vmatpush1.msra.mxu0 0.0
    %747 = vmatprep.subr.mxu0 0.0
    %748 = vmatpush1.msra.mxu0 0.0
    %749 = vmatprep.subr.mxu0 0.0
    %750 = vmatpush1.msra.mxu0 0.0
    %751 = vmatprep.subr.mxu0 0.0
    %752 = vmatpush1.msra.mxu0 0.0
    %753 = vmatprep.subr.mxu0 0.0
    %754 = vmatpush1.msra.mxu0 0.0
    %755 = vmatprep.subr.mxu0 0.0
    %756 = vmatpush1.msra.mxu0 0.0
    %757 = vmatprep.subr.mxu0 0.0
    %758 = vmatpush1.msra.mxu0 0.0
    %759 = vmatprep.subr.mxu0 0.0
    %760 = vmatpush1.msra.mxu0 0.0
    %761 = vmatprep.mubr.f32.mxu0 0.0
    %762 = vmatmul.mubr.f32.gmra.mrb[0].mxu0 %v695
    %v763 = vpop.f32.mrb[0].mxu0
    %v764 = vadd.f32 %v235, %v763
    %v765 = vpop.f32.mrb[0].mxu0
    %v766 = vadd.f32 %v237, %v765
    %767 = vdwg.mxu0
    %v768 = vxor.u32 %v764, 2147483648
    %v769 = vxor.u32 %v766, 2147483648
    %v770 = vmul.f32 %v768, 1.442695
    %v771 = vpow.pop %v770
    %v772 = vmul.f32 %v769, 1.442695
    %v773 = vpow.pop %v772
    %v774 = vadd.f32 %v771, 1.0
    %v775 = vadd.f32 %v773, 1.0
    %v776 = vrcp.pop %v774
    %v777 = vmul.f32 1.0, %v776
    %v778 = vrcp.pop %v775
    %v779 = vmul.f32 1.0, %v778
    %v780 = vmul.f32 %v779, 2.0
    %v781 = vsub.f32 %v780, 1.0
    %v782 = vmul.f32 %v777, %v687
    %784 = vrot.lane.b32.xlu0 %v781, 64
    %v785 = vpop.permute.xlu0 %784
    %v787 = vmul.f32 %v777, %v785
    %789 = vrot.lane.b32.xlu0 %v787, 64
    %v790 = vpop.permute.xlu0 %789
    %v792 = vadd.f32 %v782, %v790
    %v793 = vtanh.pop %v792
    %795 = vrot.lane.b32.xlu0 %v793, 64
    %v796 = vpop.permute.xlu0 %795
    %v798 = vmul.f32 %v779, %v796
    %v800 = vsel %vm119, %v798, 0
    %802 = vmatprep.subr.mxu0 %v59
    %803 = vmatpush1.msra.mxu0 %v58
    %804 = vmatprep.subr.mxu0 %v61
    %805 = vmatpush1.msra.mxu0 %v60
    %806 = vmatprep.subr.mxu0 %v63
    %807 = vmatpush1.msra.mxu0 %v62
    %808 = vmatprep.subr.mxu0 %v65
    %809 = vmatpush1.msra.mxu0 %v64
    %810 = vmatprep.subr.mxu0 %v67
    %811 = vmatpush1.msra.mxu0 %v66
    %812 = vmatprep.subr.mxu0 %v69
    %813 = vmatpush1.msra.mxu0 %v68
    %814 = vmatprep.subr.mxu0 %v71
    %815 = vmatpush1.msra.mxu0 %v70
    %816 = vmatprep.subr.mxu0 %v73
    %817 = vmatpush1.msra.mxu0 %v72
    %818 = vmatprep.subr.mxu0 0.0
    %819 = vmatpush1.msra.mxu0 0.0
    %820 = vmatprep.subr.mxu0 0.0
    %821 = vmatpush1.msra.mxu0 0.0
    %822 = vmatprep.subr.mxu0 0.0
    %823 = vmatpush1.msra.mxu0 0.0
    %824 = vmatprep.subr.mxu0 0.0
    %825 = vmatpush1.msra.mxu0 0.0
    %826 = vmatprep.subr.mxu0 0.0
    %827 = vmatpush1.msra.mxu0 0.0
    %828 = vmatprep.subr.mxu0 0.0
    %829 = vmatpush1.msra.mxu0 0.0
    %830 = vmatprep.subr.mxu0 0.0
    %831 = vmatpush1.msra.mxu0 0.0
    %832 = vmatprep.subr.mxu0 0.0
    %833 = vmatpush1.msra.mxu0 0.0
    %834 = vmatprep.subr.mxu0 0.0
    %835 = vmatpush1.msra.mxu0 0.0
    %836 = vmatprep.subr.mxu0 0.0
    %837 = vmatpush1.msra.mxu0 0.0
    %838 = vmatprep.subr.mxu0 0.0
    %839 = vmatpush1.msra.mxu0 0.0
    %840 = vmatprep.subr.mxu0 0.0
    %841 = vmatpush1.msra.mxu0 0.0
    %842 = vmatprep.subr.mxu0 0.0
    %843 = vmatpush1.msra.mxu0 0.0
    %844 = vmatprep.subr.mxu0 0.0
    %845 = vmatpush1.msra.mxu0 0.0
    %846 = vmatprep.subr.mxu0 0.0
    %847 = vmatpush1.msra.mxu0 0.0
    %848 = vmatprep.subr.mxu0 0.0
    %849 = vmatpush1.msra.mxu0 0.0
    %850 = vmatprep.subr.mxu0 0.0
    %851 = vmatpush1.msra.mxu0 0.0
    %852 = vmatprep.subr.mxu0 0.0
    %853 = vmatpush1.msra.mxu0 0.0
    %854 = vmatprep.subr.mxu0 0.0
    %855 = vmatpush1.msra.mxu0 0.0
    %856 = vmatprep.subr.mxu0 0.0
    %857 = vmatpush1.msra.mxu0 0.0
    %858 = vmatprep.subr.mxu0 0.0
    %859 = vmatpush1.msra.mxu0 0.0
    %860 = vmatprep.subr.mxu0 0.0
    %861 = vmatpush1.msra.mxu0 0.0
    %862 = vmatprep.subr.mxu0 0.0
    %863 = vmatpush1.msra.mxu0 0.0
    %864 = vmatprep.subr.mxu0 0.0
    %865 = vmatpush1.msra.mxu0 0.0
    %866 = vmatprep.mubr.f32.mxu0 0.0
    %867 = vmatmul.mubr.f32.gmra.mrb[0].mxu0 %v800
    %v868 = vpop.f32.mrb[0].mxu0
    %v869 = vadd.f32 %v241, %v868
    %v870 = vpop.f32.mrb[0].mxu0
    %v871 = vadd.f32 %v243, %v870
    %872 = vdwg.mxu0
    %v873 = vxor.u32 %v869, 2147483648
    %v874 = vxor.u32 %v871, 2147483648
    %v875 = vmul.f32 %v873, 1.442695
    %v876 = vpow.pop %v875
    %v877 = vmul.f32 %v874, 1.442695
    %v878 = vpow.pop %v877
    %v879 = vadd.f32 %v876, 1.0
    %v880 = vadd.f32 %v878, 1.0
    %v881 = vrcp.pop %v879
    %v882 = vmul.f32 1.0, %v881
    %v883 = vrcp.pop %v880
    %v884 = vmul.f32 1.0, %v883
    %v885 = vmul.f32 %v884, 2.0
    %v886 = vsub.f32 %v885, 1.0
    %v887 = vmul.f32 %v882, %v792
    %889 = vrot.lane.b32.xlu0 %v886, 64
    %v890 = vpop.permute.xlu0 %889
    %v892 = vmul.f32 %v882, %v890
    %894 = vrot.lane.b32.xlu0 %v892, 64
    %v895 = vpop.permute.xlu0 %894
    %v897 = vadd.f32 %v887, %v895
    %v898 = vtanh.pop %v897
    %900 = vrot.lane.b32.xlu0 %v898, 64
    %v901 = vpop.permute.xlu0 %900
    %v903 = vmul.f32 %v884, %v901
    %v905 = vsel %vm119, %v903, 0
    %907 = vmatprep.subr.mxu0 %v59
    %908 = vmatpush1.msra.mxu0 %v58
    %909 = vmatprep.subr.mxu0 %v61
    %910 = vmatpush1.msra.mxu0 %v60
    %911 = vmatprep.subr.mxu0 %v63
    %912 = vmatpush1.msra.mxu0 %v62
    %913 = vmatprep.subr.mxu0 %v65
    %914 = vmatpush1.msra.mxu0 %v64
    %915 = vmatprep.subr.mxu0 %v67
    %916 = vmatpush1.msra.mxu0 %v66
    %917 = vmatprep.subr.mxu0 %v69
    %918 = vmatpush1.msra.mxu0 %v68
    %919 = vmatprep.subr.mxu0 %v71
    %920 = vmatpush1.msra.mxu0 %v70
    %921 = vmatprep.subr.mxu0 %v73
    %922 = vmatpush1.msra.mxu0 %v72
    %923 = vmatprep.subr.mxu0 0.0
    %924 = vmatpush1.msra.mxu0 0.0
    %925 = vmatprep.subr.mxu0 0.0
    %926 = vmatpush1.msra.mxu0 0.0
    %927 = vmatprep.subr.mxu0 0.0
    %928 = vmatpush1.msra.mxu0 0.0
    %929 = vmatprep.subr.mxu0 0.0
    %930 = vmatpush1.msra.mxu0 0.0
    %931 = vmatprep.subr.mxu0 0.0
    %932 = vmatpush1.msra.mxu0 0.0
    %933 = vmatprep.subr.mxu0 0.0
    %934 = vmatpush1.msra.mxu0 0.0
    %935 = vmatprep.subr.mxu0 0.0
    %936 = vmatpush1.msra.mxu0 0.0
    %937 = vmatprep.subr.mxu0 0.0
    %938 = vmatpush1.msra.mxu0 0.0
    %939 = vmatprep.subr.mxu0 0.0
    %940 = vmatpush1.msra.mxu0 0.0
    %941 = vmatprep.subr.mxu0 0.0
    %942 = vmatpush1.msra.mxu0 0.0
    %943 = vmatprep.subr.mxu0 0.0
    %944 = vmatpush1.msra.mxu0 0.0
    %945 = vmatprep.subr.mxu0 0.0
    %946 = vmatpush1.msra.mxu0 0.0
    %947 = vmatprep.subr.mxu0 0.0
    %948 = vmatpush1.msra.mxu0 0.0
    %949 = vmatprep.subr.mxu0 0.0
    %950 = vmatpush1.msra.mxu0 0.0
    %951 = vmatprep.subr.mxu0 0.0
    %952 = vmatpush1.msra.mxu0 0.0
    %953 = vmatprep.subr.mxu0 0.0
    %954 = vmatpush1.msra.mxu0 0.0
    %955 = vmatprep.subr.mxu0 0.0
    %956 = vmatpush1.msra.mxu0 0.0
    %957 = vmatprep.subr.mxu0 0.0
    %958 = vmatpush1.msra.mxu0 0.0
    %959 = vmatprep.subr.mxu0 0.0
    %960 = vmatpush1.msra.mxu0 0.0
    %961 = vmatprep.subr.mxu0 0.0
    %962 = vmatpush1.msra.mxu0 0.0
    %963 = vmatprep.subr.mxu0 0.0
    %964 = vmatpush1.msra.mxu0 0.0
    %965 = vmatprep.subr.mxu0 0.0
    %966 = vmatpush1.msra.mxu0 0.0
    %967 = vmatprep.subr.mxu0 0.0
    %968 = vmatpush1.msra.mxu0 0.0
    %969 = vmatprep.subr.mxu0 0.0
    %970 = vmatpush1.msra.mxu0 0.0
    %971 = vmatprep.mubr.f32.mxu0 0.0
    %972 = vmatmul.mubr.f32.gmra.mrb[0].mxu0 %v905
    %v973 = vpop.f32.mrb[0].mxu0
    %v974 = vadd.f32 %v247, %v973
    %v975 = vpop.f32.mrb[0].mxu0
    %v976 = vadd.f32 %v249, %v975
    %977 = vdwg.mxu0
    %v978 = vxor.u32 %v974, 2147483648
    %v979 = vxor.u32 %v976, 2147483648
    %v980 = vmul.f32 %v978, 1.442695
    %v981 = vpow.pop %v980
    %v982 = vmul.f32 %v979, 1.442695
    %v983 = vpow.pop %v982
    %v984 = vadd.f32 %v981, 1.0
    %v985 = vadd.f32 %v983, 1.0
    %v986 = vrcp.pop %v984
    %v987 = vmul.f32 1.0, %v986
    %v988 = vrcp.pop %v985
    %v989 = vmul.f32 1.0, %v988
    %v990 = vmul.f32 %v989, 2.0
    %v991 = vsub.f32 %v990, 1.0
    %v992 = vmul.f32 %v987, %v897
    %994 = vrot.lane.b32.xlu0 %v991, 64
    %v995 = vpop.permute.xlu0 %994
    %v997 = vmul.f32 %v987, %v995
    %999 = vrot.lane.b32.xlu0 %v997, 64
    %v1000 = vpop.permute.xlu0 %999
    %v1002 = vadd.f32 %v992, %v1000
    %v1003 = vtanh.pop %v1002
    %1005 = vrot.lane.b32.xlu0 %v1003, 64
    %v1006 = vpop.permute.xlu0 %1005
    %v1008 = vmul.f32 %v989, %v1006
    %v1010 = vsel %vm119, %v1008, 0
    %1012 = vmatprep.subr.mxu0 %v59
    %1013 = vmatpush1.msra.mxu0 %v58
    %1014 = vmatprep.subr.mxu0 %v61
    %1015 = vmatpush1.msra.mxu0 %v60
    %1016 = vmatprep.subr.mxu0 %v63
    %1017 = vmatpush1.msra.mxu0 %v62
    %1018 = vmatprep.subr.mxu0 %v65
    %1019 = vmatpush1.msra.mxu0 %v64
    %1020 = vmatprep.subr.mxu0 %v67
    %1021 = vmatpush1.msra.mxu0 %v66
    %1022 = vmatprep.subr.mxu0 %v69
    %1023 = vmatpush1.msra.mxu0 %v68
    %1024 = vmatprep.subr.mxu0 %v71
    %1025 = vmatpush1.msra.mxu0 %v70
    %1026 = vmatprep.subr.mxu0 %v73
    %1027 = vmatpush1.msra.mxu0 %v72
    %1028 = vmatprep.subr.mxu0 0.0
    %1029 = vmatpush1.msra.mxu0 0.0
    %1030 = vmatprep.subr.mxu0 0.0
    %1031 = vmatpush1.msra.mxu0 0.0
    %1032 = vmatprep.subr.mxu0 0.0
    %1033 = vmatpush1.msra.mxu0 0.0
    %1034 = vmatprep.subr.mxu0 0.0
    %1035 = vmatpush1.msra.mxu0 0.0
    %1036 = vmatprep.subr.mxu0 0.0
    %1037 = vmatpush1.msra.mxu0 0.0
    %1038 = vmatprep.subr.mxu0 0.0
    %1039 = vmatpush1.msra.mxu0 0.0
    %1040 = vmatprep.subr.mxu0 0.0
    %1041 = vmatpush1.msra.mxu0 0.0
    %1042 = vmatprep.subr.mxu0 0.0
    %1043 = vmatpush1.msra.mxu0 0.0
    %1044 = vmatprep.subr.mxu0 0.0
    %1045 = vmatpush1.msra.mxu0 0.0
    %1046 = vmatprep.subr.mxu0 0.0
    %1047 = vmatpush1.msra.mxu0 0.0
    %1048 = vmatprep.subr.mxu0 0.0
    %1049 = vmatpush1.msra.mxu0 0.0
    %1050 = vmatprep.subr.mxu0 0.0
    %1051 = vmatpush1.msra.mxu0 0.0
    %1052 = vmatprep.subr.mxu0 0.0
    %1053 = vmatpush1.msra.mxu0 0.0
    %1054 = vmatprep.subr.mxu0 0.0
    %1055 = vmatpush1.msra.mxu0 0.0
    %1056 = vmatprep.subr.mxu0 0.0
    %1057 = vmatpush1.msra.mxu0 0.0
    %1058 = vmatprep.subr.mxu0 0.0
    %1059 = vmatpush1.msra.mxu0 0.0
    %1060 = vmatprep.subr.mxu0 0.0
    %1061 = vmatpush1.msra.mxu0 0.0
    %1062 = vmatprep.subr.mxu0 0.0
    %1063 = vmatpush1.msra.mxu0 0.0
    %1064 = vmatprep.subr.mxu0 0.0
    %1065 = vmatpush1.msra.mxu0 0.0
    %1066 = vmatprep.subr.mxu0 0.0
    %1067 = vmatpush1.msra.mxu0 0.0
    %1068 = vmatprep.subr.mxu0 0.0
    %1069 = vmatpush1.msra.mxu0 0.0
    %1070 = vmatprep.subr.mxu0 0.0
    %1071 = vmatpush1.msra.mxu0 0.0
    %1072 = vmatprep.subr.mxu0 0.0
    %1073 = vmatpush1.msra.mxu0 0.0
    %1074 = vmatprep.subr.mxu0 0.0
    %1075 = vmatpush1.msra.mxu0 0.0
    %1076 = vmatprep.mubr.f32.mxu0 0.0
    %1077 = vmatmul.mubr.f32.gmra.mrb[0].mxu0 %v1010
    %v1078 = vpop.f32.mrb[0].mxu0
    %v1079 = vadd.f32 %v253, %v1078
    %v1080 = vpop.f32.mrb[0].mxu0
    %v1081 = vadd.f32 %v255, %v1080
    %1082 = vdwg.mxu0
    %v1083 = vxor.u32 %v1079, 2147483648
    %v1084 = vxor.u32 %v1081, 2147483648
    %v1085 = vmul.f32 %v1083, 1.442695
    %v1086 = vpow.pop %v1085
    %v1087 = vmul.f32 %v1084, 1.442695
    %v1088 = vpow.pop %v1087
    %v1089 = vadd.f32 %v1086, 1.0
    %v1090 = vadd.f32 %v1088, 1.0
    %v1091 = vrcp.pop %v1089
    %v1092 = vmul.f32 1.0, %v1091
    %v1093 = vrcp.pop %v1090
    %v1094 = vmul.f32 1.0, %v1093
    %v1095 = vmul.f32 %v1094, 2.0
    %v1096 = vsub.f32 %v1095, 1.0
    %v1097 = vmul.f32 %v1092, %v1002
    %1099 = vrot.lane.b32.xlu0 %v1096, 64
    %v1100 = vpop.permute.xlu0 %1099
    %v1102 = vmul.f32 %v1092, %v1100
    %1104 = vrot.lane.b32.xlu0 %v1102, 64
    %v1105 = vpop.permute.xlu0 %1104
    %v1107 = vadd.f32 %v1097, %v1105
    %v1108 = vtanh.pop %v1107
    %1110 = vrot.lane.b32.xlu0 %v1108, 64
    %v1111 = vpop.permute.xlu0 %1110
    %v1113 = vmul.f32 %v1094, %v1111
    %v1115 = vsel %vm119, %v1113, 0
    %1117 = vmatprep.subr.mxu0 %v59
    %1118 = vmatpush1.msra.mxu0 %v58
    %1119 = vmatprep.subr.mxu0 %v61
    %1120 = vmatpush1.msra.mxu0 %v60
    %1121 = vmatprep.subr.mxu0 %v63
    %1122 = vmatpush1.msra.mxu0 %v62
    %1123 = vmatprep.subr.mxu0 %v65
    %1124 = vmatpush1.msra.mxu0 %v64
    %1125 = vmatprep.subr.mxu0 %v67
    %1126 = vmatpush1.msra.mxu0 %v66
    %1127 = vmatprep.subr.mxu0 %v69
    %1128 = vmatpush1.msra.mxu0 %v68
    %1129 = vmatprep.subr.mxu0 %v71
    %1130 = vmatpush1.msra.mxu0 %v70
    %1131 = vmatprep.subr.mxu0 %v73
    %1132 = vmatpush1.msra.mxu0 %v72
    %1133 = vmatprep.subr.mxu0 0.0
    %1134 = vmatpush1.msra.mxu0 0.0
    %1135 = vmatprep.subr.mxu0 0.0
    %1136 = vmatpush1.msra.mxu0 0.0
    %1137 = vmatprep.subr.mxu0 0.0
    %1138 = vmatpush1.msra.mxu0 0.0
    %1139 = vmatprep.subr.mxu0 0.0
    %1140 = vmatpush1.msra.mxu0 0.0
    %1141 = vmatprep.subr.mxu0 0.0
    %1142 = vmatpush1.msra.mxu0 0.0
    %1143 = vmatprep.subr.mxu0 0.0
    %1144 = vmatpush1.msra.mxu0 0.0
    %1145 = vmatprep.subr.mxu0 0.0
    %1146 = vmatpush1.msra.mxu0 0.0
    %1147 = vmatprep.subr.mxu0 0.0
    %1148 = vmatpush1.msra.mxu0 0.0
    %1149 = vmatprep.subr.mxu0 0.0
    %1150 = vmatpush1.msra.mxu0 0.0
    %1151 = vmatprep.subr.mxu0 0.0
    %1152 = vmatpush1.msra.mxu0 0.0
    %1153 = vmatprep.subr.mxu0 0.0
    %1154 = vmatpush1.msra.mxu0 0.0
    %1155 = vmatprep.subr.mxu0 0.0
    %1156 = vmatpush1.msra.mxu0 0.0
    %1157 = vmatprep.subr.mxu0 0.0
    %1158 = vmatpush1.msra.mxu0 0.0
    %1159 = vmatprep.subr.mxu0 0.0
    %1160 = vmatpush1.msra.mxu0 0.0
    %1161 = vmatprep.subr.mxu0 0.0
    %1162 = vmatpush1.msra.mxu0 0.0
    %1163 = vmatprep.subr.mxu0 0.0
    %1164 = vmatpush1.msra.mxu0 0.0
    %1165 = vmatprep.subr.mxu0 0.0
    %1166 = vmatpush1.msra.mxu0 0.0
    %1167 = vmatprep.subr.mxu0 0.0
    %1168 = vmatpush1.msra.mxu0 0.0
    %1169 = vmatprep.subr.mxu0 0.0
    %1170 = vmatpush1.msra.mxu0 0.0
    %1171 = vmatprep.subr.mxu0 0.0
    %1172 = vmatpush1.msra.mxu0 0.0
    %1173 = vmatprep.subr.mxu0 0.0
    %1174 = vmatpush1.msra.mxu0 0.0
    %1175 = vmatprep.subr.mxu0 0.0
    %1176 = vmatpush1.msra.mxu0 0.0
    %1177 = vmatprep.subr.mxu0 0.0
    %1178 = vmatpush1.msra.mxu0 0.0
    %1179 = vmatprep.subr.mxu0 0.0
    %1180 = vmatpush1.msra.mxu0 0.0
    %1181 = vmatprep.mubr.f32.mxu0 0.0
    %1182 = vmatmul.mubr.f32.gmra.mrb[0].mxu0 %v1115
    %v1183 = vpop.f32.mrb[0].mxu0
    %v1184 = vadd.f32 %v253, %v1183
    %v1185 = vpop.f32.mrb[0].mxu0
    %v1186 = vadd.f32 %v255, %v1185
    %1187 = vdwg.mxu0
    %v1188 = vxor.u32 %v1184, 2147483648
    %v1189 = vxor.u32 %v1186, 2147483648
    %v1190 = vmul.f32 %v1188, 1.442695
    %v1191 = vpow.pop %v1190
    %v1192 = vmul.f32 %v1189, 1.442695
    %v1193 = vpow.pop %v1192
    %v1194 = vadd.f32 %v1191, 1.0
    %v1195 = vadd.f32 %v1193, 1.0
    %v1196 = vrcp.pop %v1194
    %v1197 = vmul.f32 1.0, %v1196
    %v1198 = vrcp.pop %v1195
    %v1199 = vmul.f32 1.0, %v1198
    %v1200 = vmul.f32 %v1199, 2.0
    %v1201 = vsub.f32 %v1200, 1.0
    %v1202 = vmul.f32 %v1197, %v1107
    %1204 = vrot.lane.b32.xlu0 %v1201, 64
    %v1205 = vpop.permute.xlu0 %1204
    %v1207 = vmul.f32 %v1197, %v1205
    %1209 = vrot.lane.b32.xlu0 %v1207, 64
    %v1210 = vpop.permute.xlu0 %1209
    %v1212 = vadd.f32 %v1202, %v1210
    %v1213 = vtanh.pop %v1212
    %1215 = vrot.lane.b32.xlu0 %v1213, 64
    %v1216 = vpop.permute.xlu0 %1215
    %v1218 = vmul.f32 %v1199, %v1216
    %1220 = vrot.lane.b32.xlu0 %v1218, 96
    %v1221 = vpop.permute.xlu0 %1220
    %vm1222 = vcmask 261120
    %v1223 = vsel %vm1222, %v1221, 0
    %1225 = vmatprep.subr.mxu0 0.0
    %1226 = vmatpush1.msra.mxu0 %v78
    %1227 = vmatprep.subr.mxu0 0.0
    %1228 = vmatpush1.msra.mxu0 %v79
    %1229 = vmatprep.subr.mxu0 0.0
    %1230 = vmatpush1.msra.mxu0 %v80
    %1231 = vmatprep.subr.mxu0 0.0
    %1232 = vmatpush1.msra.mxu0 %v81
    %1233 = vmatprep.subr.mxu0 0.0
    %1234 = vmatpush1.msra.mxu0 0.0
    %1235 = vmatprep.subr.mxu0 0.0
    %1236 = vmatpush1.msra.mxu0 0.0
    %1237 = vmatprep.subr.mxu0 0.0
    %1238 = vmatpush1.msra.mxu0 0.0
    %1239 = vmatprep.subr.mxu0 0.0
    %1240 = vmatpush1.msra.mxu0 0.0
    %1241 = vmatprep.subr.mxu0 0.0
    %1242 = vmatpush1.msra.mxu0 0.0
    %1243 = vmatprep.subr.mxu0 0.0
    %1244 = vmatpush1.msra.mxu0 0.0
    %1245 = vmatprep.subr.mxu0 0.0
    %1246 = vmatpush1.msra.mxu0 0.0
    %1247 = vmatprep.subr.mxu0 0.0
    %1248 = vmatpush1.msra.mxu0 0.0
    %1249 = vmatprep.subr.mxu0 0.0
    %1250 = vmatpush1.msra.mxu0 0.0
    %1251 = vmatprep.subr.mxu0 0.0
    %1252 = vmatpush1.msra.mxu0 0.0
    %1253 = vmatprep.subr.mxu0 0.0
    %1254 = vmatpush1.msra.mxu0 0.0
    %1255 = vmatprep.subr.mxu0 0.0
    %1256 = vmatpush1.msra.mxu0 0.0
    %1257 = vmatprep.subr.mxu0 0.0
    %1258 = vmatpush1.msra.mxu0 0.0
    %1259 = vmatprep.subr.mxu0 0.0
    %1260 = vmatpush1.msra.mxu0 0.0
    %1261 = vmatprep.subr.mxu0 0.0
    %1262 = vmatpush1.msra.mxu0 0.0
    %1263 = vmatprep.subr.mxu0 0.0
    %1264 = vmatpush1.msra.mxu0 0.0
    %1265 = vmatprep.subr.mxu0 0.0
    %1266 = vmatpush1.msra.mxu0 0.0
    %1267 = vmatprep.subr.mxu0 0.0
    %1268 = vmatpush1.msra.mxu0 0.0
    %1269 = vmatprep.subr.mxu0 0.0
    %1270 = vmatpush1.msra.mxu0 0.0
    %1271 = vmatprep.subr.mxu0 0.0
    %1272 = vmatpush1.msra.mxu0 0.0
    %1273 = vmatprep.subr.mxu0 0.0
    %1274 = vmatpush1.msra.mxu0 0.0
    %1275 = vmatprep.subr.mxu0 0.0
    %1276 = vmatpush1.msra.mxu0 0.0
    %1277 = vmatprep.subr.mxu0 0.0
    %1278 = vmatpush1.msra.mxu0 0.0
    %1279 = vmatprep.subr.mxu0 0.0
    %1280 = vmatpush1.msra.mxu0 0.0
    %1281 = vmatprep.subr.mxu0 0.0
    %1282 = vmatpush1.msra.mxu0 0.0
    %1283 = vmatprep.subr.mxu0 0.0
    %1284 = vmatpush1.msra.mxu0 0.0
    %1285 = vmatprep.subr.mxu0 0.0
    %1286 = vmatpush1.msra.mxu0 0.0
    %1287 = vmatprep.subr.mxu0 0.0
    %1288 = vmatpush1.msra.mxu0 0.0
    %1289 = vmatprep.mubr.f32.mxu0 0.0
    %1290 = vmatmul.mubr.f32.gmra.mrb[0].mxu0 %v1223
    %v1291 = vpop.f32.mrb[0].mxu0
    %v1292 = vadd.f32 %v82, %v1291
    %v1293 = vpop.f32.mrb[0].mxu0
    %1294 = vdwg.mxu0
    %v1295 = vmul.f32 %v1292, 0.01
    %v1296 = vmax.f32 %v1292, %v1295
    %1297 = vmatprep.subr.mxu0 0.0
    %1298 = vmatpush1.msra.mxu0 %v83
    %1299 = vmatprep.subr.mxu0 0.0
    %1300 = vmatpush1.msra.mxu0 %v84
    %1301 = vmatprep.subr.mxu0 0.0
    %1302 = vmatpush1.msra.mxu0 %v85
    %1303 = vmatprep.subr.mxu0 0.0
    %1304 = vmatpush1.msra.mxu0 %v86
    %1305 = vmatprep.subr.mxu0 0.0
    %1306 = vmatpush1.msra.mxu0 %v87
    %1307 = vmatprep.subr.mxu0 0.0
    %1308 = vmatpush1.msra.mxu0 %v88
    %1309 = vmatprep.subr.mxu0 0.0
    %1310 = vmatpush1.msra.mxu0 %v89
    %1311 = vmatprep.subr.mxu0 0.0
    %1312 = vmatpush1.msra.mxu0 %v90
    %1313 = vmatprep.subr.mxu0 0.0
    %1314 = vmatpush1.msra.mxu0 %v91
    %1315 = vmatprep.subr.mxu0 0.0
    %1316 = vmatpush1.msra.mxu0 %v92
    %1317 = vmatprep.subr.mxu0 0.0
    %1318 = vmatpush1.msra.mxu0 %v93
    %1319 = vmatprep.subr.mxu0 0.0
    %1320 = vmatpush1.msra.mxu0 %v94
    %1321 = vmatprep.subr.mxu0 0.0
    %1322 = vmatpush1.msra.mxu0 %v95
    %1323 = vmatprep.subr.mxu0 0.0
    %1324 = vmatpush1.msra.mxu0 %v96
    %1325 = vmatprep.subr.mxu0 0.0
    %1326 = vmatpush1.msra.mxu0 %v97
    %1327 = vmatprep.subr.mxu0 0.0
    %1328 = vmatpush1.msra.mxu0 %v98
    %1329 = vmatprep.subr.mxu0 0.0
    %1330 = vmatpush1.msra.mxu0 0.0
    %1331 = vmatprep.subr.mxu0 0.0
    %1332 = vmatpush1.msra.mxu0 0.0
    %1333 = vmatprep.subr.mxu0 0.0
    %1334 = vmatpush1.msra.mxu0 0.0
    %1335 = vmatprep.subr.mxu0 0.0
    %1336 = vmatpush1.msra.mxu0 0.0
    %1337 = vmatprep.subr.mxu0 0.0
    %1338 = vmatpush1.msra.mxu0 0.0
    %1339 = vmatprep.subr.mxu0 0.0
    %1340 = vmatpush1.msra.mxu0 0.0
    %1341 = vmatprep.subr.mxu0 0.0
    %1342 = vmatpush1.msra.mxu0 0.0
    %1343 = vmatprep.subr.mxu0 0.0
    %1344 = vmatpush1.msra.mxu0 0.0
    %1345 = vmatprep.subr.mxu0 0.0
    %1346 = vmatpush1.msra.mxu0 0.0
    %1347 = vmatprep.subr.mxu0 0.0
    %1348 = vmatpush1.msra.mxu0 0.0
    %1349 = vmatprep.subr.mxu0 0.0
    %1350 = vmatpush1.msra.mxu0 0.0
    %1351 = vmatprep.subr.mxu0 0.0
    %1352 = vmatpush1.msra.mxu0 0.0
    %1353 = vmatprep.subr.mxu0 0.0
    %1354 = vmatpush1.msra.mxu0 0.0
    %1355 = vmatprep.subr.mxu0 0.0
    %1356 = vmatpush1.msra.mxu0 0.0
    %1357 = vmatprep.subr.mxu0 0.0
    %1358 = vmatpush1.msra.mxu0 0.0
    %1359 = vmatprep.subr.mxu0 0.0
    %1360 = vmatpush1.msra.mxu0 0.0
    %1361 = vmatprep.mubr.f32.mxu0 0.0
    %1362 = vmatmul.mubr.f32.gmra.mrb[0].mxu0 %v1296
    %v1363 = vpop.f32.mrb[0].mxu0
    %v1364 = vadd.f32 %v99, %v1363
    %v1365 = vpop.f32.mrb[0].mxu0
    %1366 = vdwg.mxu0
    %1367 = vst [vmem:[%s3] sm:$0xff] %v1364
    // Predicated region
    $region22: #{lstm_clf_forward.1} parent=1 // pred_check
      _
    $region23: #{lstm_clf_forward.1} parent=1 // pred_check_branch
      %1369 = sbr.rel (0) target = $region25
    $region24: #{lstm_clf_forward.1} parent=1 // pred_region
      _
    $region25: #{lstm_clf_forward.1} parent=1 // pred_fallthru
      _
    // Predicated region
    $region26: #{lstm_clf_forward.1} parent=1 // pred_check
      _
    $region27: #{lstm_clf_forward.1} parent=1 // pred_check_branch
      %1371 = sbr.rel (0) target = $region29
    $region28: #{lstm_clf_forward.1} parent=1 // pred_region
      _
    $region29: #{lstm_clf_forward.1} parent=1 // pred_fallthru
      _
    %1372 = vsyncpa [#allocation3], 1
    %1373 = vsyncpa [#allocation5], 1

</llo_original>
